<compile_context>
chip_gen: v7x
topology: tpu7x:2x2x1
jax: 0.10.0
libtpu: 0.0.40
codegen_flags: <defaults>
</compile_context>

<pallas_src>
import functools

import jax
import jax.numpy as jnp
from jax.experimental import pallas as pl
from jax.experimental.pallas import tpu as pltpu


_LANE = 128                      # pad feature / hidden / label dims to this
_NEG = -1e30                     # fill for padded label columns (softmax mask)
_VMEM_LIMIT = 32 * 1024 * 1024   # explicit scoped-VMEM budget (fits v5e/v6e/v7x)
_RESIDENT_SUPPORT_BYTES = 16 * 1024 * 1024  # ceiling for fully VMEM-resident support


def _round_up(v, m):
    return (v + m - 1) // m * m


def _choose_tiles(n):
    """Padded node count and row/K tile size.

    Pads at most to the next 256-row boundary (128 for tiny graphs) and picks
    the largest tile in {512, 256, 128} that divides the padded size, so big
    graphs get DMA-amortizing 512 tiles while N~200 graphs stay at 256.
    """
    if n <= 128:
        return 128, 128
    np_ = _round_up(n, 256)
    tile = 512 if np_ % 512 == 0 else 256
    return np_, tile


# ---------------------------------------------------------------------------
# Kernel A: feature transform  support = x @ W   (tiled over node rows)
# ---------------------------------------------------------------------------
def _xw_kernel(x_ref, w_ref, out_ref):
    out_ref[...] = jnp.dot(
        x_ref[...], w_ref[...], preferred_element_type=jnp.float32
    ).astype(out_ref.dtype)


def _feature_transform(x, w, *, tm):
    n, f = x.shape
    c = w.shape[1]
    return pl.pallas_call(
        _xw_kernel,
        out_shape=jax.ShapeDtypeStruct((n, c), jnp.bfloat16),
        grid_spec=pltpu.PrefetchScalarGridSpec(
            num_scalar_prefetch=0,
            grid=(n // tm,),
            in_specs=[
                pl.BlockSpec((tm, f), lambda i: (i, 0)),   # stream node rows
                pl.BlockSpec((f, c), lambda i: (0, 0)),    # weight, resident
            ],
            out_specs=pl.BlockSpec((tm, c), lambda i: (i, 0)),
        ),
        compiler_params=pltpu.CompilerParams(
            dimension_semantics=("parallel",),
            vmem_limit_bytes=_VMEM_LIMIT,
        ),
    )(x, w)


# ---------------------------------------------------------------------------
# Kernel B: aggregation  out = epilogue(adj @ support + b)
#   grid = (node-row tiles, K-reduction tiles over adj columns)
#   f32 accumulator scratch, init at k==0, bias + epilogue at k==last.
#   epilogue == "relu_matmul": out = relu(acc + b) @ W2   (fused layer-2 support)
#   epilogue == "log_softmax": out = log_softmax(acc + b)
# ---------------------------------------------------------------------------
def _agg_kernel(*refs, epilogue, resident, tk):
    if epilogue == "relu_matmul":
        adj_ref, s_ref, b_ref, w2_ref, out_ref, acc_ref = refs
    else:
        adj_ref, s_ref, b_ref, out_ref, acc_ref = refs
        w2_ref = None

    k = pl.program_id(1)

    @pl.when(k == 0)
    def _init():
        acc_ref[...] = jnp.zeros_like(acc_ref)

    if resident:
        # support is fully VMEM-resident; slice the k-th row chunk in-kernel.
        ks = pl.multiple_of(k * tk, tk)
        s_tile = s_ref[pl.ds(ks, tk), :]
    else:
        s_tile = s_ref[...]

    acc_ref[...] += jnp.dot(
        adj_ref[...], s_tile, preferred_element_type=jnp.float32
    )

    @pl.when(k == pl.num_programs(1) - 1)
    def _finalize():
        z = acc_ref[...] + b_ref[...]          # bias added once, in f32
        if epilogue == "relu_matmul":
            h = jnp.maximum(z, 0.0).astype(jnp.bfloat16)
            out_ref[...] = jnp.dot(
                h, w2_ref[...], preferred_element_type=jnp.float32
            ).astype(out_ref.dtype)
        else:  # log_softmax over the padded, lane-dense label axis
            m = jnp.max(z, axis=1, keepdims=True)
            sh = z - m
            lse = jnp.log(jnp.sum(jnp.exp(sh), axis=1, keepdims=True))
            out_ref[...] = (sh - lse).astype(out_ref.dtype)


def _aggregate(adj, support, bias, w2=None, *, epilogue, out_dtype, tm, tk):
    n = adj.shape[0]
    c = support.shape[1]
    c_out = w2.shape[1] if w2 is not None else c

    # Keep support VMEM-resident (DMA'd once, constant block index) whenever
    # it fits the budget; otherwise stream (tk, c) row chunks per k step.
    resident = 2 * n * c * support.dtype.itemsize <= _RESIDENT_SUPPORT_BYTES
    if resident:
        s_spec = pl.BlockSpec((n, c), lambda i, k: (0, 0))
    else:
        s_spec = pl.BlockSpec((tk, c), lambda i, k: (k, 0))

    in_specs = [
        pl.BlockSpec((tm, tk), lambda i, k: (i, k)),   # stream adj tiles
        s_spec,
        pl.BlockSpec((1, c), lambda i, k: (0, 0)),     # bias, resident
    ]
    args = [adj, support, bias]
    if w2 is not None:
        in_specs.append(pl.BlockSpec(w2.shape, lambda i, k: (0, 0)))  # W2, resident
        args.append(w2)

    kernel = functools.partial(
        _agg_kernel, epilogue=epilogue, resident=resident, tk=tk
    )
    return pl.pallas_call(
        kernel,
        out_shape=jax.ShapeDtypeStruct((n, c_out), out_dtype),
        grid_spec=pltpu.PrefetchScalarGridSpec(
            num_scalar_prefetch=0,
            grid=(n // tm, n // tk),
            in_specs=in_specs,
            out_specs=pl.BlockSpec((tm, c_out), lambda i, k: (i, 0)),
            scratch_shapes=[pltpu.VMEM((tm, c), jnp.float32)],
        ),
        compiler_params=pltpu.CompilerParams(
            dimension_semantics=("parallel", "arbitrary"),
            vmem_limit_bytes=_VMEM_LIMIT,
        ),
    )(*args)


# ---------------------------------------------------------------------------
# Adjacency preprocessing: done ONCE (adj is constant for a GCN), so the
# N^2 pad + f32->bf16 cast is not repeated every forward call.
# ---------------------------------------------------------------------------
def prepare_adjacency(adj):
    n = adj.shape[0]
    np_, _ = _choose_tiles(n)
    return jnp.pad(adj, ((0, np_ - n), (0, np_ - n))).astype(jnp.bfloat16)


# ---------------------------------------------------------------------------
# Wrapper: pad to MXU/lane-friendly shapes, run the two GraphConv layers.
# ---------------------------------------------------------------------------
@jax.jit
def gcn_forward(x, adj_p, w1, b1, w2, b2):
    n, f = x.shape
    h_dim = w1.shape[1]
    l_dim = w2.shape[1]

    np_, tile = _choose_tiles(n)
    assert adj_p.shape == (np_, np_), "adj_p must come from prepare_adjacency"
    fp = _round_up(f, _LANE)
    hp = _round_up(h_dim, _LANE)
    lp = _round_up(l_dim, _LANE)

    # Pad + cast small operands (cheap).  Biases stay f32 (added into the f32
    # accumulator at finalize).  Padded label columns get a large-negative bias
    # so they drop out of the log-softmax denominator; keep that add in f32.
    x_p = jnp.pad(x, ((0, np_ - n), (0, fp - f))).astype(jnp.bfloat16)
    w1_p = jnp.pad(w1, ((0, fp - f), (0, hp - h_dim))).astype(jnp.bfloat16)
    b1_p = jnp.pad(b1.astype(jnp.float32), ((0, 0), (0, hp - h_dim)))
    w2_p = jnp.pad(w2, ((0, hp - h_dim), (0, lp - l_dim))).astype(jnp.bfloat16)
    b2_p = jnp.pad(
        b2.astype(jnp.float32), ((0, 0), (0, lp - l_dim)), constant_values=_NEG
    )

    # ---- GraphConv 1 (with the layer-2 feature transform fused in) ----
    support1 = _feature_transform(x_p, w1_p, tm=tile)            # (Np, Hp) bf16
    # support2 = relu(adj @ support1 + b1) @ W2 — h never round-trips HBM.
    support2 = _aggregate(adj_p, support1, b1_p, w2_p,
                          epilogue="relu_matmul",
                          out_dtype=jnp.bfloat16, tm=tile, tk=tile)

    # Dropout: inference mode (training=False) -> identity.
    # TODO(synk): training-mode dropout would use pltpu.prng_seed / prng_random_bits.

    # ---- GraphConv 2: out = log_softmax(adj @ support2 + b2) ----
    out_p = _aggregate(adj_p, support2, b2_p,
                       epilogue="log_softmax",
                       out_dtype=jnp.float32, tm=tile, tk=tile)

    return out_p[:n, :l_dim]


# ---------------------------------------------------------------------------
# Test harness
# ---------------------------------------------------------------------------
def _make_params(key, num_features, hidden, num_labels):
    k1, k2, k3, k4 = jax.random.split(key, 4)
    s1 = 1.0 / jnp.sqrt(hidden)
    s2 = 1.0 / jnp.sqrt(num_labels)
    w1 = jax.random.uniform(k1, (num_features, hidden), jnp.float32, -s1, s1)
    b1 = jax.random.uniform(k2, (1, hidden), jnp.float32, -s1, s1)
    w2 = jax.random.uniform(k3, (hidden, num_labels), jnp.float32, -s2, s2)
    b2 = jax.random.uniform(k4, (1, num_labels), jnp.float32, -s2, s2)
    return w1, b1, w2, b2


def _make_adj(key, n):
    # random symmetric adjacency with self-loops, row-normalized (dense, f32).
    a = (jax.random.uniform(key, (n, n)) < 0.05).astype(jnp.float32)
    a = jnp.maximum(a, a.T)
    a = a + jnp.eye(n, dtype=jnp.float32)
    deg = jnp.sum(a, axis=1, keepdims=True)
    return a / deg


def _reference(x, adj, w1, b1, w2, b2):
    h = jnp.maximum(adj @ (x @ w1) + b1, 0.0)
    z = adj @ (h @ w2) + b2
    return jax.nn.log_softmax(z, axis=1)


if __name__ == "__main__":
    key = jax.random.PRNGKey(0)
    k_x, k_adj, k_p = jax.random.split(key, 3)

    n_nodes = 200
    num_features = 96
    hidden = 48
    num_labels = 7

    x = jax.random.normal(k_x, (n_nodes, num_features), jnp.float32)
    adj = _make_adj(k_adj, n_nodes)
    w1, b1, w2, b2 = _make_params(k_p, num_features, hidden, num_labels)

    # Adjacency is constant for a GCN: pad + bf16-cast once, reuse every call.
    adj_p = jax.block_until_ready(prepare_adjacency(adj))

    out = gcn_forward(x, adj_p, w1, b1, w2, b2)
    out = jax.block_until_ready(out)

    ref = _reference(x, adj, w1, b1, w2, b2)
    assert out.shape == (n_nodes, num_labels)
    # bf16 operands with f32 accumulation -> loose tolerance vs. f32 reference.
    assert jnp.allclose(out, ref, atol=2e-2, rtol=2e-2), (
        float(jnp.max(jnp.abs(out - ref)))
    )

    print("KERNEL_OK")
</pallas_src>

<mosaic_0001>
module attributes {stable_mosaic.version = 11 : i64} {
  func.func @_xw_kernel(%arg0: i32, %arg1: memref<256x128xbf16, #tpu.memory_space<vmem>>, %arg2: memref<128x128xbf16, #tpu.memory_space<vmem>>, %arg3: memref<256x128xbf16, #tpu.memory_space<vmem>>) attributes {dimension_semantics = [#tpu.dimension_semantics<parallel>], iteration_bounds = array<i64: 1>, scalar_prefetch = 0 : i64, scratch_operands = 0 : i64, tpu.core_type = #tpu.core_type<tc>, window_params = [{transform_indices = @transform_0, window_bounds = array<i64: 256, 128>}, {pipeline_mode = #tpu.pipeline_mode<synchronous>, transform_indices = @transform_1, window_bounds = array<i64: 128, 128>}, {transform_indices = @transform_2, window_bounds = array<i64: 256, 128>}]} {
    %c0 = arith.constant 0 : index
    %c0_0 = arith.constant 0 : index
    %0 = vector.load %arg1[%c0, %c0_0] : memref<256x128xbf16, #tpu.memory_space<vmem>>, vector<256x128xbf16>
    %c0_1 = arith.constant 0 : index
    %c0_2 = arith.constant 0 : index
    %1 = vector.load %arg2[%c0_1, %c0_2] : memref<128x128xbf16, #tpu.memory_space<vmem>>, vector<128x128xbf16>
    %cst = arith.constant dense<0.000000e+00> : vector<256x128xf32>
    %2 = tpu.matmul %0, %1, %cst {dimension_numbers = #tpu.dot_dimension_numbers<[1], [0], [0], [1], [0, 0, 1, 1], [], []>} : vector<256x128xbf16>, vector<128x128xbf16>, vector<256x128xf32> -> vector<256x128xf32>
    %3 = arith.truncf %2 : vector<256x128xf32> to vector<256x128xbf16>
    %c0_3 = arith.constant 0 : index
    %c0_4 = arith.constant 0 : index
    %4 = vector.load %arg3[%c0_3, %c0_4] : memref<256x128xbf16, #tpu.memory_space<vmem>>, vector<256x128xbf16>
    tpu.vector_store %arg3[%c0_3, %c0_4], %3 {strides = array<i32>} : memref<256x128xbf16, #tpu.memory_space<vmem>>, vector<256x128xbf16>,
    return
  }
  func.func @transform_0(%arg0: i32) -> (i32, i32) {
    %c0_i32 = arith.constant 0 : i32
    %c0_i32_0 = arith.constant 0 : i32
    return %arg0, %c0_i32 : i32, i32
  }
  func.func @transform_1(%arg0: i32) -> (i32, i32) {
    %c0_i32 = arith.constant 0 : i32
    %c0_i32_0 = arith.constant 0 : i32
    %c0_i32_1 = arith.constant 0 : i32
    return %c0_i32, %c0_i32_0 : i32, i32
  }
  func.func @transform_2(%arg0: i32) -> (i32, i32) {
    %c0_i32 = arith.constant 0 : i32
    %c0_i32_0 = arith.constant 0 : i32
    return %arg0, %c0_i32 : i32, i32
  }
}

module attributes {stable_mosaic.version = 11 : i64} {
  func.func @_agg_kernel(%arg0: i32, %arg1: i32, %arg2: memref<256x256xbf16, #tpu.memory_space<vmem>>, %arg3: memref<256x128xbf16, #tpu.memory_space<vmem>>, %arg4: memref<1x128xf32, #tpu.memory_space<vmem>>, %arg5: memref<128x128xbf16, #tpu.memory_space<vmem>>, %arg6: memref<256x128xbf16, #tpu.memory_space<vmem>>, %arg7: memref<256x128xf32, #tpu.memory_space<vmem>>) attributes {dimension_semantics = [#tpu.dimension_semantics<parallel>, #tpu.dimension_semantics<arbitrary>], iteration_bounds = array<i64: 1, 1>, scalar_prefetch = 0 : i64, scratch_operands = 1 : i64, tpu.core_type = #tpu.core_type<tc>, window_params = [{transform_indices = @transform_0, window_bounds = array<i64: 256, 256>}, {pipeline_mode = #tpu.pipeline_mode<synchronous>, transform_indices = @transform_1, window_bounds = array<i64: 256, 128>}, {pipeline_mode = #tpu.pipeline_mode<synchronous>, transform_indices = @transform_2, window_bounds = array<i64: 1, 128>}, {pipeline_mode = #tpu.pipeline_mode<synchronous>, transform_indices = @transform_3, window_bounds = array<i64: 128, 128>}, {transform_indices = @transform_4, window_bounds = array<i64: 256, 128>}]} {
    %c0_i32 = arith.constant 0 : i32
    %0 = arith.cmpi eq, %arg1, %c0_i32 : i32
    %1 = arith.extui %0 : i1 to i32
    %c0_i32_0 = arith.constant 0 : i32
    %2 = arith.cmpi ne, %1, %c0_i32_0 : i32
    scf.if %2 {
      %cst_9 = arith.constant 0.000000e+00 : f32
      %15 = vector.broadcast %cst_9 : f32 to vector<256x128xf32>
      %c0_10 = arith.constant 0 : index
      %c0_11 = arith.constant 0 : index
      %16 = vector.load %arg7[%c0_10, %c0_11] : memref<256x128xf32, #tpu.memory_space<vmem>>, vector<256x128xf32>
      tpu.vector_store %arg7[%c0_10, %c0_11], %15 {strides = array<i32>} : memref<256x128xf32, #tpu.memory_space<vmem>>, vector<256x128xf32>,
    } else {
    }
    %c256_i32 = arith.constant 256 : i32
    %3 = arith.muli %arg1, %c256_i32 : i32
    %4 = tpu.assume_multiple %3, 256 : i32
    %5 = arith.index_cast %4 : i32 to index
    %c0 = arith.constant 0 : index
    %6 = vector.load %arg3[%5, %c0] : memref<256x128xbf16, #tpu.memory_space<vmem>>, vector<256x128xbf16>
    %c0_1 = arith.constant 0 : index
    %c0_2 = arith.constant 0 : index
    %7 = vector.load %arg7[%c0_1, %c0_2] : memref<256x128xf32, #tpu.memory_space<vmem>>, vector<256x128xf32>
    %c0_3 = arith.constant 0 : index
    %c0_4 = arith.constant 0 : index
    %8 = vector.load %arg2[%c0_3, %c0_4] : memref<256x256xbf16, #tpu.memory_space<vmem>>, vector<256x256xbf16>
    %cst = arith.constant dense<0.000000e+00> : vector<256x128xf32>
    %9 = tpu.matmul %8, %6, %cst {dimension_numbers = #tpu.dot_dimension_numbers<[1], [0], [0], [1], [0, 0, 1, 1], [], []>} : vector<256x256xbf16>, vector<256x128xbf16>, vector<256x128xf32> -> vector<256x128xf32>
    %10 = arith.addf %7, %9 : vector<256x128xf32>
    %c0_5 = arith.constant 0 : index
    %c0_6 = arith.constant 0 : index
    %11 = vector.load %arg7[%c0_5, %c0_6] : memref<256x128xf32, #tpu.memory_space<vmem>>, vector<256x128xf32>
    tpu.vector_store %arg7[%c0_5, %c0_6], %10 {strides = array<i32>} : memref<256x128xf32, #tpu.memory_space<vmem>>, vector<256x128xf32>,
    %c0_i32_7 = arith.constant 0 : i32
    %12 = arith.cmpi eq, %arg1, %c0_i32_7 : i32
    %13 = arith.extui %12 : i1 to i32
    %c0_i32_8 = arith.constant 0 : i32
    %14 = arith.cmpi ne, %13, %c0_i32_8 : i32
    scf.if %14 {
      %c0_9 = arith.constant 0 : index
      %c0_10 = arith.constant 0 : index
      %15 = vector.load %arg7[%c0_9, %c0_10] : memref<256x128xf32, #tpu.memory_space<vmem>>, vector<256x128xf32>
      %c0_11 = arith.constant 0 : index
      %c0_12 = arith.constant 0 : index
      %16 = vector.load %arg4[%c0_11, %c0_12] : memref<1x128xf32, #tpu.memory_space<vmem>>, vector<1x128xf32>
      %17 = vector.broadcast %16 : vector<1x128xf32> to vector<256x128xf32>
      %18 = arith.addf %15, %17 : vector<256x128xf32>
      %cst_13 = arith.constant 0.000000e+00 : f32
      %19 = vector.broadcast %cst_13 : f32 to vector<256x128xf32>
      %20 = arith.maximumf %18, %19 : vector<256x128xf32>
      %21 = arith.truncf %20 : vector<256x128xf32> to vector<256x128xbf16>
      %c0_14 = arith.constant 0 : index
      %c0_15 = arith.constant 0 : index
      %22 = vector.load %arg5[%c0_14, %c0_15] : memref<128x128xbf16, #tpu.memory_space<vmem>>, vector<128x128xbf16>
      %cst_16 = arith.constant dense<0.000000e+00> : vector<256x128xf32>
      %23 = tpu.matmul %21, %22, %cst_16 {dimension_numbers = #tpu.dot_dimension_numbers<[1], [0], [0], [1], [0, 0, 1, 1], [], []>} : vector<256x128xbf16>, vector<128x128xbf16>, vector<256x128xf32> -> vector<256x128xf32>
      %24 = arith.truncf %23 : vector<256x128xf32> to vector<256x128xbf16>
      %c0_17 = arith.constant 0 : index
      %c0_18 = arith.constant 0 : index
      %25 = vector.load %arg6[%c0_17, %c0_18] : memref<256x128xbf16, #tpu.memory_space<vmem>>, vector<256x128xbf16>
      tpu.vector_store %arg6[%c0_17, %c0_18], %24 {strides = array<i32>} : memref<256x128xbf16, #tpu.memory_space<vmem>>, vector<256x128xbf16>,
    } else {
    }
    return
  }
  func.func @transform_0(%arg0: i32, %arg1: i32) -> (i32, i32) {
    %c0_i32 = arith.constant 0 : i32
    return %arg0, %arg1 : i32, i32
  }
  func.func @transform_1(%arg0: i32, %arg1: i32) -> (i32, i32) {
    %c0_i32 = arith.constant 0 : i32
    %c0_i32_0 = arith.constant 0 : i32
    %c0_i32_1 = arith.constant 0 : i32
    return %c0_i32, %c0_i32_0 : i32, i32
  }
  func.func @transform_2(%arg0: i32, %arg1: i32) -> (i32, i32) {
    %c0_i32 = arith.constant 0 : i32
    %c0_i32_0 = arith.constant 0 : i32
    %c0_i32_1 = arith.constant 0 : i32
    return %c0_i32, %c0_i32_0 : i32, i32
  }
  func.func @transform_3(%arg0: i32, %arg1: i32) -> (i32, i32) {
    %c0_i32 = arith.constant 0 : i32
    %c0_i32_0 = arith.constant 0 : i32
    %c0_i32_1 = arith.constant 0 : i32
    return %c0_i32, %c0_i32_0 : i32, i32
  }
  func.func @transform_4(%arg0: i32, %arg1: i32) -> (i32, i32) {
    %c0_i32 = arith.constant 0 : i32
    %c0_i32_0 = arith.constant 0 : i32
    return %arg0, %c0_i32 : i32, i32
  }
}

module attributes {stable_mosaic.version = 11 : i64} {
  func.func @_agg_kernel(%arg0: i32, %arg1: i32, %arg2: memref<256x256xbf16, #tpu.memory_space<vmem>>, %arg3: memref<256x128xbf16, #tpu.memory_space<vmem>>, %arg4: memref<1x128xf32, #tpu.memory_space<vmem>>, %arg5: memref<256x128xf32, #tpu.memory_space<vmem>>, %arg6: memref<256x128xf32, #tpu.memory_space<vmem>>) attributes {dimension_semantics = [#tpu.dimension_semantics<parallel>, #tpu.dimension_semantics<arbitrary>], iteration_bounds = array<i64: 1, 1>, scalar_prefetch = 0 : i64, scratch_operands = 1 : i64, tpu.core_type = #tpu.core_type<tc>, window_params = [{transform_indices = @transform_0, window_bounds = array<i64: 256, 256>}, {pipeline_mode = #tpu.pipeline_mode<synchronous>, transform_indices = @transform_1, window_bounds = array<i64: 256, 128>}, {pipeline_mode = #tpu.pipeline_mode<synchronous>, transform_indices = @transform_2, window_bounds = array<i64: 1, 128>}, {transform_indices = @transform_3, window_bounds = array<i64: 256, 128>}]} {
    %c0_i32 = arith.constant 0 : i32
    %0 = arith.cmpi eq, %arg1, %c0_i32 : i32
    %1 = arith.extui %0 : i1 to i32
    %c0_i32_0 = arith.constant 0 : i32
    %2 = arith.cmpi ne, %1, %c0_i32_0 : i32
    scf.if %2 {
      %cst_9 = arith.constant 0.000000e+00 : f32
      %15 = vector.broadcast %cst_9 : f32 to vector<256x128xf32>
      %c0_10 = arith.constant 0 : index
      %c0_11 = arith.constant 0 : index
      %16 = vector.load %arg6[%c0_10, %c0_11] : memref<256x128xf32, #tpu.memory_space<vmem>>, vector<256x128xf32>
      tpu.vector_store %arg6[%c0_10, %c0_11], %15 {strides = array<i32>} : memref<256x128xf32, #tpu.memory_space<vmem>>, vector<256x128xf32>,
    } else {
    }
    %c256_i32 = arith.constant 256 : i32
    %3 = arith.muli %arg1, %c256_i32 : i32
    %4 = tpu.assume_multiple %3, 256 : i32
    %5 = arith.index_cast %4 : i32 to index
    %c0 = arith.constant 0 : index
    %6 = vector.load %arg3[%5, %c0] : memref<256x128xbf16, #tpu.memory_space<vmem>>, vector<256x128xbf16>
    %c0_1 = arith.constant 0 : index
    %c0_2 = arith.constant 0 : index
    %7 = vector.load %arg6[%c0_1, %c0_2] : memref<256x128xf32, #tpu.memory_space<vmem>>, vector<256x128xf32>
    %c0_3 = arith.constant 0 : index
    %c0_4 = arith.constant 0 : index
    %8 = vector.load %arg2[%c0_3, %c0_4] : memref<256x256xbf16, #tpu.memory_space<vmem>>, vector<256x256xbf16>
    %cst = arith.constant dense<0.000000e+00> : vector<256x128xf32>
    %9 = tpu.matmul %8, %6, %cst {dimension_numbers = #tpu.dot_dimension_numbers<[1], [0], [0], [1], [0, 0, 1, 1], [], []>} : vector<256x256xbf16>, vector<256x128xbf16>, vector<256x128xf32> -> vector<256x128xf32>
    %10 = arith.addf %7, %9 : vector<256x128xf32>
    %c0_5 = arith.constant 0 : index
    %c0_6 = arith.constant 0 : index
    %11 = vector.load %arg6[%c0_5, %c0_6] : memref<256x128xf32, #tpu.memory_space<vmem>>, vector<256x128xf32>
    tpu.vector_store %arg6[%c0_5, %c0_6], %10 {strides = array<i32>} : memref<256x128xf32, #tpu.memory_space<vmem>>, vector<256x128xf32>,
    %c0_i32_7 = arith.constant 0 : i32
    %12 = arith.cmpi eq, %arg1, %c0_i32_7 : i32
    %13 = arith.extui %12 : i1 to i32
    %c0_i32_8 = arith.constant 0 : i32
    %14 = arith.cmpi ne, %13, %c0_i32_8 : i32
    scf.if %14 {
      %c0_9 = arith.constant 0 : index
      %c0_10 = arith.constant 0 : index
      %15 = vector.load %arg6[%c0_9, %c0_10] : memref<256x128xf32, #tpu.memory_space<vmem>>, vector<256x128xf32>
      %c0_11 = arith.constant 0 : index
      %c0_12 = arith.constant 0 : index
      %16 = vector.load %arg4[%c0_11, %c0_12] : memref<1x128xf32, #tpu.memory_space<vmem>>, vector<1x128xf32>
      %17 = vector.broadcast %16 : vector<1x128xf32> to vector<256x128xf32>
      %18 = arith.addf %15, %17 : vector<256x128xf32>
      %cst_13 = arith.constant dense<0xFF800000> : vector<256xf32>
      %19 = vector.multi_reduction <maximumf>, %18, %cst_13 [1] : vector<256x128xf32> to vector<256xf32>
      %20 = vector.shape_cast %19 : vector<256xf32> to vector<256x1xf32>
      %21 = vector.broadcast %20 : vector<256x1xf32> to vector<256x128xf32>
      %22 = arith.subf %18, %21 : vector<256x128xf32>
      %23 = math.exp %22 : vector<256x128xf32>
      %cst_14 = arith.constant dense<0.000000e+00> : vector<256xf32>
      %24 = vector.multi_reduction <add>, %23, %cst_14 [1] : vector<256x128xf32> to vector<256xf32>
      %25 = vector.shape_cast %24 : vector<256xf32> to vector<256x1xf32>
      %26 = math.log %25 : vector<256x1xf32>
      %27 = vector.broadcast %26 : vector<256x1xf32> to vector<256x128xf32>
      %28 = arith.subf %22, %27 : vector<256x128xf32>
      %c0_15 = arith.constant 0 : index
      %c0_16 = arith.constant 0 : index
      %29 = vector.load %arg5[%c0_15, %c0_16] : memref<256x128xf32, #tpu.memory_space<vmem>>, vector<256x128xf32>
      tpu.vector_store %arg5[%c0_15, %c0_16], %28 {strides = array<i32>} : memref<256x128xf32, #tpu.memory_space<vmem>>, vector<256x128xf32>,
    } else {
    }
    return
  }
  func.func @transform_0(%arg0: i32, %arg1: i32) -> (i32, i32) {
    %c0_i32 = arith.constant 0 : i32
    return %arg0, %arg1 : i32, i32
  }
  func.func @transform_1(%arg0: i32, %arg1: i32) -> (i32, i32) {
    %c0_i32 = arith.constant 0 : i32
    %c0_i32_0 = arith.constant 0 : i32
    %c0_i32_1 = arith.constant 0 : i32
    return %c0_i32, %c0_i32_0 : i32, i32
  }
  func.func @transform_2(%arg0: i32, %arg1: i32) -> (i32, i32) {
    %c0_i32 = arith.constant 0 : i32
    %c0_i32_0 = arith.constant 0 : i32
    %c0_i32_1 = arith.constant 0 : i32
    return %c0_i32, %c0_i32_0 : i32, i32
  }
  func.func @transform_3(%arg0: i32, %arg1: i32) -> (i32, i32) {
    %c0_i32 = arith.constant 0 : i32
    %c0_i32_0 = arith.constant 0 : i32
    return %arg0, %c0_i32 : i32, i32
  }
}

</mosaic_0001>

<llo_original>
// kernel: gcn_forward.3
$region0: #{gcn_forward.3}
  #allocation0 [shape = 'u32[]', space=smem, size = 0x4, offset = 0x4, fixed_abs, tag = 'smem constant byte address 0x4 - core index']
  #allocation1 [shape = 'u32[144,128]{1,0:T(1,128)}', space=vmem, size = 0x12000, scoped, tag = 'internal scratch']
  %s0 = inlined_call_operand.vmem [shape: bf16[256,128], index: 0, kind: input, shape index: {}]
  %s1 = inlined_call_operand.vmem [shape: bf16[128,128], index: 1, kind: input, shape index: {}]
  %s2 = inlined_call_operand.vmem [shape: bf16[256,128], index: 2, kind: output, shape index: {}]
  %s3 = sld [smem:[#allocation0]]
  $region18: #{gcn_forward.3} parent=0
    _
  %s5 = ssub.s32 1, %s3
  %s6 = scalar_select 0, %s5, %s3
  // Predicated region
  $region2: #{gcn_forward.3} parent=0 // pred_check
    _
  $region3: #{gcn_forward.3} parent=0 // pred_check_branch
    %8 = sbr.rel (0) target = $region5
  $region4: #{gcn_forward.3} parent=0 // pred_region
    _
  $region5: #{gcn_forward.3} parent=0 // pred_fallthru
    _
  // Predicated region
  $region6: #{gcn_forward.3} parent=0 // pred_check
    _
  $region7: #{gcn_forward.3} parent=0 // pred_check_branch
    %10 = sbr.rel (0) target = $region9
  $region8: #{gcn_forward.3} parent=0 // pred_region
    _
  $region9: #{gcn_forward.3} parent=0 // pred_fallthru
    _
  %v12 = vld [vmem:[%s0] sm:$0xf]
  %v13 = vld [vmem:[%s0 + $0x4] sm:$0xf]
  %v14 = vld [vmem:[%s0 + $0x8] sm:$0xf]
  %v15 = vld [vmem:[%s0 + $0xc] sm:$0xf]
  %v16 = vld [vmem:[%s0 + $0x10] sm:$0xf]
  %v17 = vld [vmem:[%s0 + $0x14] sm:$0xf]
  %v18 = vld [vmem:[%s0 + $0x18] sm:$0xf]
  %v19 = vld [vmem:[%s0 + $0x1c] sm:$0xf]
  %v20 = vld [vmem:[%s0 + $0x20] sm:$0xf]
  %v21 = vld [vmem:[%s0 + $0x24] sm:$0xf]
  %v22 = vld [vmem:[%s0 + $0x28] sm:$0xf]
  %v23 = vld [vmem:[%s0 + $0x2c] sm:$0xf]
  %v24 = vld [vmem:[%s0 + $0x30] sm:$0xf]
  %v25 = vld [vmem:[%s0 + $0x34] sm:$0xf]
  %v26 = vld [vmem:[%s0 + $0x38] sm:$0xf]
  %v27 = vld [vmem:[%s0 + $0x3c] sm:$0xf]
  %v28 = vld [vmem:[%s0 + $0x40] sm:$0xf]
  %v29 = vld [vmem:[%s0 + $0x44] sm:$0xf]
  %v30 = vld [vmem:[%s0 + $0x48] sm:$0xf]
  %v31 = vld [vmem:[%s0 + $0x4c] sm:$0xf]
  %v32 = vld [vmem:[%s0 + $0x50] sm:$0xf]
  %v33 = vld [vmem:[%s0 + $0x54] sm:$0xf]
  %v34 = vld [vmem:[%s0 + $0x58] sm:$0xf]
  %v35 = vld [vmem:[%s0 + $0x5c] sm:$0xf]
  %v36 = vld [vmem:[%s0 + $0x60] sm:$0xf]
  %v37 = vld [vmem:[%s0 + $0x64] sm:$0xf]
  %v38 = vld [vmem:[%s0 + $0x68] sm:$0xf]
  %v39 = vld [vmem:[%s0 + $0x6c] sm:$0xf]
  %v40 = vld [vmem:[%s0 + $0x70] sm:$0xf]
  %v41 = vld [vmem:[%s0 + $0x74] sm:$0xf]
  %v42 = vld [vmem:[%s0 + $0x78] sm:$0xf]
  %v43 = vld [vmem:[%s0 + $0x7c] sm:$0xf]
  %v44 = vld [vmem:[%s1] sm:$0xf]
  %v45 = vld [vmem:[%s1 + $0x4] sm:$0xf]
  %v46 = vld [vmem:[%s1 + $0x8] sm:$0xf]
  %v47 = vld [vmem:[%s1 + $0xc] sm:$0xf]
  %v48 = vld [vmem:[%s1 + $0x10] sm:$0xf]
  %v49 = vld [vmem:[%s1 + $0x14] sm:$0xf]
  %v50 = vld [vmem:[%s1 + $0x18] sm:$0xf]
  %v51 = vld [vmem:[%s1 + $0x1c] sm:$0xf]
  %v52 = vld [vmem:[%s1 + $0x20] sm:$0xf]
  %v53 = vld [vmem:[%s1 + $0x24] sm:$0xf]
  %v54 = vld [vmem:[%s1 + $0x28] sm:$0xf]
  %v55 = vld [vmem:[%s1 + $0x2c] sm:$0xf]
  %v56 = vld [vmem:[%s1 + $0x30] sm:$0xf]
  %v57 = vld [vmem:[%s1 + $0x34] sm:$0xf]
  %v58 = vld [vmem:[%s1 + $0x38] sm:$0xf]
  %v59 = vld [vmem:[%s1 + $0x3c] sm:$0xf]
  %v92 = vunpack.c.l.b16 %v12
  %v93 = vunpack.c.l.b16 %v13
  %v94 = vunpack.c.l.b16 %v14
  %v95 = vunpack.c.l.b16 %v15
  %v96 = vunpack.c.l.b16 %v16
  %v97 = vunpack.c.l.b16 %v17
  %v98 = vunpack.c.l.b16 %v18
  %v99 = vunpack.c.l.b16 %v19
  %v100 = vunpack.c.l.b16 %v20
  %v101 = vunpack.c.l.b16 %v21
  %v102 = vunpack.c.l.b16 %v22
  %v103 = vunpack.c.l.b16 %v23
  %v104 = vunpack.c.l.b16 %v24
  %v105 = vunpack.c.l.b16 %v25
  %v106 = vunpack.c.l.b16 %v26
  %v107 = vunpack.c.l.b16 %v27
  %v108 = vunpack.c.l.b16 %v28
  %v109 = vunpack.c.l.b16 %v29
  %v110 = vunpack.c.l.b16 %v30
  %v111 = vunpack.c.l.b16 %v31
  %v112 = vunpack.c.l.b16 %v32
  %v113 = vunpack.c.l.b16 %v33
  %v114 = vunpack.c.l.b16 %v34
  %v115 = vunpack.c.l.b16 %v35
  %v116 = vunpack.c.l.b16 %v36
  %v117 = vunpack.c.l.b16 %v37
  %v118 = vunpack.c.l.b16 %v38
  %v119 = vunpack.c.l.b16 %v39
  %v120 = vunpack.c.l.b16 %v40
  %v121 = vunpack.c.l.b16 %v41
  %v122 = vunpack.c.l.b16 %v42
  %v123 = vunpack.c.l.b16 %v43
  %v124 = vpack.c.b16 %v93, %v92
  %v125 = vpack.c.b16 %v95, %v94
  %v126 = vpack.c.b16 %v97, %v96
  %v127 = vpack.c.b16 %v99, %v98
  %v128 = vpack.c.b16 %v101, %v100
  %v129 = vpack.c.b16 %v103, %v102
  %v130 = vpack.c.b16 %v105, %v104
  %v131 = vpack.c.b16 %v107, %v106
  %v132 = vpack.c.b16 %v109, %v108
  %v133 = vpack.c.b16 %v111, %v110
  %v134 = vpack.c.b16 %v113, %v112
  %v135 = vpack.c.b16 %v115, %v114
  %v136 = vpack.c.b16 %v117, %v116
  %v137 = vpack.c.b16 %v119, %v118
  %v138 = vpack.c.b16 %v121, %v120
  %v139 = vpack.c.b16 %v123, %v122
  %v172 = vunpack.c.l.b16 %v44
  %v173 = vunpack.c.l.b16 %v45
  %v174 = vunpack.c.l.b16 %v46
  %v175 = vunpack.c.l.b16 %v47
  %v176 = vunpack.c.l.b16 %v48
  %v177 = vunpack.c.l.b16 %v49
  %v178 = vunpack.c.l.b16 %v50
  %v179 = vunpack.c.l.b16 %v51
  %v180 = vunpack.c.l.b16 %v52
  %v181 = vunpack.c.l.b16 %v53
  %v182 = vunpack.c.l.b16 %v54
  %v183 = vunpack.c.l.b16 %v55
  %v184 = vunpack.c.l.b16 %v56
  %v185 = vunpack.c.l.b16 %v57
  %v186 = vunpack.c.l.b16 %v58
  %v187 = vunpack.c.l.b16 %v59
  %v188 = vpack.c.b16 %v173, %v172
  %v189 = vpack.c.b16 %v175, %v174
  %v190 = vpack.c.b16 %v177, %v176
  %v191 = vpack.c.b16 %v179, %v178
  %v192 = vpack.c.b16 %v181, %v180
  %v193 = vpack.c.b16 %v183, %v182
  %v194 = vpack.c.b16 %v185, %v184
  %v195 = vpack.c.b16 %v187, %v186
  %204 = vmatprep.subr.bf16.mxu0 0
  %205 = vmatpush1.bf16.msra.mxu0 %v188
  %206 = vmatprep.subr.bf16.mxu0 0
  %207 = vmatpush1.bf16.msra.mxu0 %v189
  %208 = vmatprep.subr.bf16.mxu0 0
  %209 = vmatpush1.bf16.msra.mxu0 %v190
  %210 = vmatprep.subr.bf16.mxu0 0
  %211 = vmatpush1.bf16.msra.mxu0 %v191
  %212 = vmatprep.subr.bf16.mxu0 0
  %213 = vmatpush1.bf16.msra.mxu0 %v192
  %214 = vmatprep.subr.bf16.mxu0 0
  %215 = vmatpush1.bf16.msra.mxu0 %v193
  %216 = vmatprep.subr.bf16.mxu0 0
  %217 = vmatpush1.bf16.msra.mxu0 %v194
  %218 = vmatprep.subr.bf16.mxu0 0
  %219 = vmatpush1.bf16.msra.mxu0 %v195
  %220 = vmatprep.subr.bf16.mxu0 0
  %221 = vmatpush1.bf16.msra.mxu0 0
  %222 = vmatprep.subr.bf16.mxu0 0
  %223 = vmatpush1.bf16.msra.mxu0 0
  %224 = vmatprep.subr.bf16.mxu0 0
  %225 = vmatpush1.bf16.msra.mxu0 0
  %226 = vmatprep.subr.bf16.mxu0 0
  %227 = vmatpush1.bf16.msra.mxu0 0
  %228 = vmatprep.subr.bf16.mxu0 0
  %229 = vmatpush1.bf16.msra.mxu0 0
  %230 = vmatprep.subr.bf16.mxu0 0
  %231 = vmatpush1.bf16.msra.mxu0 0
  %232 = vmatprep.subr.bf16.mxu0 0
  %233 = vmatpush1.bf16.msra.mxu0 0
  %234 = vmatprep.subr.bf16.mxu0 0
  %235 = vmatpush1.bf16.msra.mxu0 0
  %236 = vmatprep.mubr.bf16.mxu0 0
  %237 = vmatmul.mubr.bf16.gmra.mrb[0].mxu0 %v124
  %v238 = vpop.f32.mrb[0].mxu0
  %v239 = vadd.f32 0.0, %v238
  %v240 = vpop.f32.mrb[0].mxu0
  %v241 = vpop.f32.mrb[0].mxu0
  %v242 = vadd.f32 0.0, %v241
  %v243 = vpop.f32.mrb[0].mxu0
  %244 = vmatprep.mubr.bf16.mxu0 0
  %245 = vmatmul.mubr.bf16.gmra.mrb[0].mxu0 %v125
  %v246 = vpop.f32.mrb[0].mxu0
  %v247 = vadd.f32 0.0, %v246
  %v248 = vpop.f32.mrb[0].mxu0
  %v249 = vpop.f32.mrb[0].mxu0
  %v250 = vadd.f32 0.0, %v249
  %v251 = vpop.f32.mrb[0].mxu0
  %252 = vmatprep.mubr.bf16.mxu0 0
  %253 = vmatmul.mubr.bf16.gmra.mrb[0].mxu0 %v126
  %v254 = vpop.f32.mrb[0].mxu0
  %v255 = vadd.f32 0.0, %v254
  %v256 = vpop.f32.mrb[0].mxu0
  %v257 = vpop.f32.mrb[0].mxu0
  %v258 = vadd.f32 0.0, %v257
  %v259 = vpop.f32.mrb[0].mxu0
  %260 = vmatprep.mubr.bf16.mxu0 0
  %261 = vmatmul.mubr.bf16.gmra.mrb[0].mxu0 %v127
  %v262 = vpop.f32.mrb[0].mxu0
  %v263 = vadd.f32 0.0, %v262
  %v264 = vpop.f32.mrb[0].mxu0
  %v265 = vpop.f32.mrb[0].mxu0
  %v266 = vadd.f32 0.0, %v265
  %v267 = vpop.f32.mrb[0].mxu0
  %268 = vmatprep.mubr.bf16.mxu0 0
  %269 = vmatmul.mubr.bf16.gmra.mrb[0].mxu0 %v128
  %v270 = vpop.f32.mrb[0].mxu0
  %v271 = vadd.f32 0.0, %v270
  %v272 = vpop.f32.mrb[0].mxu0
  %v273 = vpop.f32.mrb[0].mxu0
  %v274 = vadd.f32 0.0, %v273
  %v275 = vpop.f32.mrb[0].mxu0
  %276 = vmatprep.mubr.bf16.mxu0 0
  %277 = vmatmul.mubr.bf16.gmra.mrb[0].mxu0 %v129
  %v278 = vpop.f32.mrb[0].mxu0
  %v279 = vadd.f32 0.0, %v278
  %v280 = vpop.f32.mrb[0].mxu0
  %v281 = vpop.f32.mrb[0].mxu0
  %v282 = vadd.f32 0.0, %v281
  %v283 = vpop.f32.mrb[0].mxu0
  %284 = vmatprep.mubr.bf16.mxu0 0
  %285 = vmatmul.mubr.bf16.gmra.mrb[0].mxu0 %v130
  %v286 = vpop.f32.mrb[0].mxu0
  %v287 = vadd.f32 0.0, %v286
  %v288 = vpop.f32.mrb[0].mxu0
  %v289 = vpop.f32.mrb[0].mxu0
  %v290 = vadd.f32 0.0, %v289
  %v291 = vpop.f32.mrb[0].mxu0
  %292 = vmatprep.mubr.bf16.mxu0 0
  %293 = vmatmul.mubr.bf16.gmra.mrb[0].mxu0 %v131
  %v294 = vpop.f32.mrb[0].mxu0
  %v295 = vadd.f32 0.0, %v294
  %v296 = vpop.f32.mrb[0].mxu0
  %v297 = vpop.f32.mrb[0].mxu0
  %v298 = vadd.f32 0.0, %v297
  %v299 = vpop.f32.mrb[0].mxu0
  %300 = vmatprep.mubr.bf16.mxu0 0
  %301 = vmatmul.mubr.bf16.gmra.mrb[0].mxu0 %v132
  %v302 = vpop.f32.mrb[0].mxu0
  %v303 = vadd.f32 0.0, %v302
  %v304 = vpop.f32.mrb[0].mxu0
  %v305 = vpop.f32.mrb[0].mxu0
  %v306 = vadd.f32 0.0, %v305
  %v307 = vpop.f32.mrb[0].mxu0
  %308 = vmatprep.mubr.bf16.mxu0 0
  %309 = vmatmul.mubr.bf16.gmra.mrb[0].mxu0 %v133
  %v310 = vpop.f32.mrb[0].mxu0
  %v311 = vadd.f32 0.0, %v310
  %v312 = vpop.f32.mrb[0].mxu0
  %v313 = vpop.f32.mrb[0].mxu0
  %v314 = vadd.f32 0.0, %v313
  %v315 = vpop.f32.mrb[0].mxu0
  %316 = vmatprep.mubr.bf16.mxu0 0
  %317 = vmatmul.mubr.bf16.gmra.mrb[0].mxu0 %v134
  %v318 = vpop.f32.mrb[0].mxu0
  %v319 = vadd.f32 0.0, %v318
  %v320 = vpop.f32.mrb[0].mxu0
  %v321 = vpop.f32.mrb[0].mxu0
  %v322 = vadd.f32 0.0, %v321
  %v323 = vpop.f32.mrb[0].mxu0
  %324 = vmatprep.mubr.bf16.mxu0 0
  %325 = vmatmul.mubr.bf16.gmra.mrb[0].mxu0 %v135
  %v326 = vpop.f32.mrb[0].mxu0
  %v327 = vadd.f32 0.0, %v326
  %v328 = vpop.f32.mrb[0].mxu0
  %v329 = vpop.f32.mrb[0].mxu0
  %v330 = vadd.f32 0.0, %v329
  %v331 = vpop.f32.mrb[0].mxu0
  %332 = vmatprep.mubr.bf16.mxu0 0
  %333 = vmatmul.mubr.bf16.gmra.mrb[0].mxu0 %v136
  %v334 = vpop.f32.mrb[0].mxu0
  %v335 = vadd.f32 0.0, %v334
  %v336 = vpop.f32.mrb[0].mxu0
  %v337 = vpop.f32.mrb[0].mxu0
  %v338 = vadd.f32 0.0, %v337
  %v339 = vpop.f32.mrb[0].mxu0
  %340 = vmatprep.mubr.bf16.mxu0 0
  %341 = vmatmul.mubr.bf16.gmra.mrb[0].mxu0 %v137
  %v342 = vpop.f32.mrb[0].mxu0
  %v343 = vadd.f32 0.0, %v342
  %v344 = vpop.f32.mrb[0].mxu0
  %v345 = vpop.f32.mrb[0].mxu0
  %v346 = vadd.f32 0.0, %v345
  %v347 = vpop.f32.mrb[0].mxu0
  %348 = vmatprep.mubr.bf16.mxu0 0
  %349 = vmatmul.mubr.bf16.gmra.mrb[0].mxu0 %v138
  %v350 = vpop.f32.mrb[0].mxu0
  %v351 = vadd.f32 0.0, %v350
  %v352 = vpop.f32.mrb[0].mxu0
  %v353 = vpop.f32.mrb[0].mxu0
  %v354 = vadd.f32 0.0, %v353
  %v355 = vpop.f32.mrb[0].mxu0
  %356 = vmatprep.mubr.bf16.mxu0 0
  %357 = vmatmul.mubr.bf16.gmra.mrb[0].mxu0 %v139
  %v358 = vpop.f32.mrb[0].mxu0
  %v359 = vadd.f32 0.0, %v358
  %v360 = vpop.f32.mrb[0].mxu0
  %v361 = vpop.f32.mrb[0].mxu0
  %v362 = vadd.f32 0.0, %v361
  %v363 = vpop.f32.mrb[0].mxu0
  %364 = vdwg.mxu0
  %v365 = vpack.c.bf16 %v242, %v239
  %v366 = vpack.c.bf16 %v250, %v247
  %v367 = vpack.c.bf16 %v258, %v255
  %v368 = vpack.c.bf16 %v266, %v263
  %v369 = vpack.c.bf16 %v274, %v271
  %v370 = vpack.c.bf16 %v282, %v279
  %v371 = vpack.c.bf16 %v290, %v287
  %v372 = vpack.c.bf16 %v298, %v295
  %v373 = vpack.c.bf16 %v306, %v303
  %v374 = vpack.c.bf16 %v314, %v311
  %v375 = vpack.c.bf16 %v322, %v319
  %v376 = vpack.c.bf16 %v330, %v327
  %v377 = vpack.c.bf16 %v338, %v335
  %v378 = vpack.c.bf16 %v346, %v343
  %v379 = vpack.c.bf16 %v354, %v351
  %v380 = vpack.c.bf16 %v362, %v359
  %v397 = vunpack.c.l.b16 %v365
  %v398 = vunpack.c.h.b16 %v365
  %v399 = vunpack.c.l.b16 %v366
  %v400 = vunpack.c.h.b16 %v366
  %v401 = vunpack.c.l.b16 %v367
  %v402 = vunpack.c.h.b16 %v367
  %v403 = vunpack.c.l.b16 %v368
  %v404 = vunpack.c.h.b16 %v368
  %v405 = vunpack.c.l.b16 %v369
  %v406 = vunpack.c.h.b16 %v369
  %v407 = vunpack.c.l.b16 %v370
  %v408 = vunpack.c.h.b16 %v370
  %v409 = vunpack.c.l.b16 %v371
  %v410 = vunpack.c.h.b16 %v371
  %v411 = vunpack.c.l.b16 %v372
  %v412 = vunpack.c.h.b16 %v372
  %v413 = vunpack.c.l.b16 %v373
  %v414 = vunpack.c.h.b16 %v373
  %v415 = vunpack.c.l.b16 %v374
  %v416 = vunpack.c.h.b16 %v374
  %v417 = vunpack.c.l.b16 %v375
  %v418 = vunpack.c.h.b16 %v375
  %v419 = vunpack.c.l.b16 %v376
  %v420 = vunpack.c.h.b16 %v376
  %v421 = vunpack.c.l.b16 %v377
  %v422 = vunpack.c.h.b16 %v377
  %v423 = vunpack.c.l.b16 %v378
  %v424 = vunpack.c.h.b16 %v378
  %v425 = vunpack.c.l.b16 %v379
  %v426 = vunpack.c.h.b16 %v379
  %v427 = vunpack.c.l.b16 %v380
  %v428 = vunpack.c.h.b16 %v380
  %v429 = vpack.c.b16 %v397, %v397
  %v430 = vpack.c.b16 %v398, %v398
  %v431 = vpack.c.b16 %v399, %v399
  %v432 = vpack.c.b16 %v400, %v400
  %v433 = vpack.c.b16 %v401, %v401
  %v434 = vpack.c.b16 %v402, %v402
  %v435 = vpack.c.b16 %v403, %v403
  %v436 = vpack.c.b16 %v404, %v404
  %v437 = vpack.c.b16 %v405, %v405
  %v438 = vpack.c.b16 %v406, %v406
  %v439 = vpack.c.b16 %v407, %v407
  %v440 = vpack.c.b16 %v408, %v408
  %v441 = vpack.c.b16 %v409, %v409
  %v442 = vpack.c.b16 %v410, %v410
  %v443 = vpack.c.b16 %v411, %v411
  %v444 = vpack.c.b16 %v412, %v412
  %v445 = vpack.c.b16 %v413, %v413
  %v446 = vpack.c.b16 %v414, %v414
  %v447 = vpack.c.b16 %v415, %v415
  %v448 = vpack.c.b16 %v416, %v416
  %v449 = vpack.c.b16 %v417, %v417
  %v450 = vpack.c.b16 %v418, %v418
  %v451 = vpack.c.b16 %v419, %v419
  %v452 = vpack.c.b16 %v420, %v420
  %v453 = vpack.c.b16 %v421, %v421
  %v454 = vpack.c.b16 %v422, %v422
  %v455 = vpack.c.b16 %v423, %v423
  %v456 = vpack.c.b16 %v424, %v424
  %v457 = vpack.c.b16 %v425, %v425
  %v458 = vpack.c.b16 %v426, %v426
  %v459 = vpack.c.b16 %v427, %v427
  %v460 = vpack.c.b16 %v428, %v428
  %493 = vst [vmem:[%s2] sm:$0xf] %v429
  %494 = vst [vmem:[%s2 + $0x4] sm:$0xf] %v430
  %495 = vst [vmem:[%s2 + $0x8] sm:$0xf] %v431
  %496 = vst [vmem:[%s2 + $0xc] sm:$0xf] %v432
  %497 = vst [vmem:[%s2 + $0x10] sm:$0xf] %v433
  %498 = vst [vmem:[%s2 + $0x14] sm:$0xf] %v434
  %499 = vst [vmem:[%s2 + $0x18] sm:$0xf] %v435
  %500 = vst [vmem:[%s2 + $0x1c] sm:$0xf] %v436
  %501 = vst [vmem:[%s2 + $0x20] sm:$0xf] %v437
  %502 = vst [vmem:[%s2 + $0x24] sm:$0xf] %v438
  %503 = vst [vmem:[%s2 + $0x28] sm:$0xf] %v439
  %504 = vst [vmem:[%s2 + $0x2c] sm:$0xf] %v440
  %505 = vst [vmem:[%s2 + $0x30] sm:$0xf] %v441
  %506 = vst [vmem:[%s2 + $0x34] sm:$0xf] %v442
  %507 = vst [vmem:[%s2 + $0x38] sm:$0xf] %v443
  %508 = vst [vmem:[%s2 + $0x3c] sm:$0xf] %v444
  %509 = vst [vmem:[%s2 + $0x40] sm:$0xf] %v445
  %510 = vst [vmem:[%s2 + $0x44] sm:$0xf] %v446
  %511 = vst [vmem:[%s2 + $0x48] sm:$0xf] %v447
  %512 = vst [vmem:[%s2 + $0x4c] sm:$0xf] %v448
  %513 = vst [vmem:[%s2 + $0x50] sm:$0xf] %v449
  %514 = vst [vmem:[%s2 + $0x54] sm:$0xf] %v450
  %515 = vst [vmem:[%s2 + $0x58] sm:$0xf] %v451
  %516 = vst [vmem:[%s2 + $0x5c] sm:$0xf] %v452
  %517 = vst [vmem:[%s2 + $0x60] sm:$0xf] %v453
  %518 = vst [vmem:[%s2 + $0x64] sm:$0xf] %v454
  %519 = vst [vmem:[%s2 + $0x68] sm:$0xf] %v455
  %520 = vst [vmem:[%s2 + $0x6c] sm:$0xf] %v456
  %521 = vst [vmem:[%s2 + $0x70] sm:$0xf] %v457
  %522 = vst [vmem:[%s2 + $0x74] sm:$0xf] %v458
  %523 = vst [vmem:[%s2 + $0x78] sm:$0xf] %v459
  %524 = vst [vmem:[%s2 + $0x7c] sm:$0xf] %v460
  // Predicated region
  $region10: #{gcn_forward.3} parent=0 // pred_check
    _
  $region11: #{gcn_forward.3} parent=0 // pred_check_branch
    %526 = sbr.rel (0) target = $region13
  $region12: #{gcn_forward.3} parent=0 // pred_region
    _
  $region13: #{gcn_forward.3} parent=0 // pred_fallthru
    _
  // Predicated region
  $region14: #{gcn_forward.3} parent=0 // pred_check
    _
  $region15: #{gcn_forward.3} parent=0 // pred_check_branch
    %528 = sbr.rel (0) target = $region17
  $region16: #{gcn_forward.3} parent=0 // pred_region
    _
  $region17: #{gcn_forward.3} parent=0 // pred_fallthru
    _

// kernel: gcn_forward.5
$region0: #{gcn_forward.5}
  #allocation0 [shape = 'u32[]', space=smem, size = 0x4, offset = 0x4, fixed_abs, tag = 'smem constant byte address 0x4 - core index']
  #allocation1 [shape = 'u32[144,128]{1,0:T(1,128)}', space=vmem, size = 0x12000, scoped, tag = 'internal scratch']
  #allocation2 [shape = 'f32[256,128]{1,0:T(8,128)}', space=vmem, size = 0x20000, scoped, tag = 'scratch operand']
  %s0 = inlined_call_operand.vmem [shape: bf16[256,256], index: 0, kind: input, shape index: {}]
  %s1 = inlined_call_operand.vmem [shape: bf16[256,128], index: 1, kind: input, shape index: {}]
  %s2 = inlined_call_operand.vmem [shape: f32[1,128], index: 2, kind: input, shape index: {}]
  %s3 = inlined_call_operand.vmem [shape: f32[256,128], index: 3, kind: output, shape index: {}]
  %s4 = sld [smem:[#allocation0]]
  $region30: #{gcn_forward.5} parent=0
    _
  %s6 = ssub.s32 1, %s4
  %s7 = scalar_select 0, %s6, %s4
  // Predicated region
  $region2: #{gcn_forward.5} parent=0 // pred_check
    _
  $region3: #{gcn_forward.5} parent=0 // pred_check_branch
    %9 = sbr.rel (0) target = $region5
  $region4: #{gcn_forward.5} parent=0 // pred_region
    _
  $region5: #{gcn_forward.5} parent=0 // pred_fallthru
    _
  // Predicated region
  $region6: #{gcn_forward.5} parent=0 // pred_check
    _
  $region7: #{gcn_forward.5} parent=0 // pred_check_branch
    %11 = sbr.rel (0) target = $region9
  $region8: #{gcn_forward.5} parent=0 // pred_region
    _
  $region9: #{gcn_forward.5} parent=0 // pred_fallthru
    _
  // Predicated region
  $region10: #{gcn_forward.5} parent=0 // pred_check
    _
  $region11: #{gcn_forward.5} parent=0 // pred_check_branch
    %13 = sbr.rel (0) target = $region13
  $region12: #{gcn_forward.5} parent=0 // pred_region
    _
  $region13: #{gcn_forward.5} parent=0 // pred_fallthru
    _
  %p15 = scmp.eq.s32.totalorder 0, 0
  // Predicated region
  $region14: #{gcn_forward.5} parent=0 // pred_check
    %p16 = pneg %p15
  $region15: #{gcn_forward.5} parent=0 // pred_check_branch
    %18 = sbr.rel (%p16) target = $region17
  $region16: #{gcn_forward.5} parent=0 // pred_region
    %19 = vst [vmem:[#allocation2] sm:$0xff] 0.0
    %20 = vst [vmem:[#allocation2 + $0x8] sm:$0xff] 0.0
    %21 = vst [vmem:[#allocation2 + $0x10] sm:$0xff] 0.0
    %22 = vst [vmem:[#allocation2 + $0x18] sm:$0xff] 0.0
    %23 = vst [vmem:[#allocation2 + $0x20] sm:$0xff] 0.0
    %24 = vst [vmem:[#allocation2 + $0x28] sm:$0xff] 0.0
    %25 = vst [vmem:[#allocation2 + $0x30] sm:$0xff] 0.0
    %26 = vst [vmem:[#allocation2 + $0x38] sm:$0xff] 0.0
    %27 = vst [vmem:[#allocation2 + $0x40] sm:$0xff] 0.0
    %28 = vst [vmem:[#allocation2 + $0x48] sm:$0xff] 0.0
    %29 = vst [vmem:[#allocation2 + $0x50] sm:$0xff] 0.0
    %30 = vst [vmem:[#allocation2 + $0x58] sm:$0xff] 0.0
    %31 = vst [vmem:[#allocation2 + $0x60] sm:$0xff] 0.0
    %32 = vst [vmem:[#allocation2 + $0x68] sm:$0xff] 0.0
    %33 = vst [vmem:[#allocation2 + $0x70] sm:$0xff] 0.0
    %34 = vst [vmem:[#allocation2 + $0x78] sm:$0xff] 0.0
    %35 = vst [vmem:[#allocation2 + $0x80] sm:$0xff] 0.0
    %36 = vst [vmem:[#allocation2 + $0x88] sm:$0xff] 0.0
    %37 = vst [vmem:[#allocation2 + $0x90] sm:$0xff] 0.0
    %38 = vst [vmem:[#allocation2 + $0x98] sm:$0xff] 0.0
    %39 = vst [vmem:[#allocation2 + $0xa0] sm:$0xff] 0.0
    %40 = vst [vmem:[#allocation2 + $0xa8] sm:$0xff] 0.0
    %41 = vst [vmem:[#allocation2 + $0xb0] sm:$0xff] 0.0
    %42 = vst [vmem:[#allocation2 + $0xb8] sm:$0xff] 0.0
    %43 = vst [vmem:[#allocation2 + $0xc0] sm:$0xff] 0.0
    %44 = vst [vmem:[#allocation2 + $0xc8] sm:$0xff] 0.0
    %45 = vst [vmem:[#allocation2 + $0xd0] sm:$0xff] 0.0
    %46 = vst [vmem:[#allocation2 + $0xd8] sm:$0xff] 0.0
    %47 = vst [vmem:[#allocation2 + $0xe0] sm:$0xff] 0.0
    %48 = vst [vmem:[#allocation2 + $0xe8] sm:$0xff] 0.0
    %49 = vst [vmem:[#allocation2 + $0xf0] sm:$0xff] 0.0
    %50 = vst [vmem:[#allocation2 + $0xf8] sm:$0xff] 0.0
  $region17: #{gcn_forward.5} parent=0 // pred_fallthru
    _
  %s51 = smul.u32 0, 256
  %s52 = sshra.s32 %s51, 3
  %s53 = sand.u32 %s51, 7
  %s54 = smul.addr %s52, 4
  %s55 = scalar_lea.vmem %s1, %s54
  %v56 = vld [vmem:[%s55] sm:$0xf]
  %v57 = vld [vmem:[%s55 + $0x4] sm:$0xf]
  %v58 = vld [vmem:[%s55 + $0x8] sm:$0xf]
  %v59 = vld [vmem:[%s55 + $0xc] sm:$0xf]
  %v60 = vld [vmem:[%s55 + $0x10] sm:$0xf]
  %v61 = vld [vmem:[%s55 + $0x14] sm:$0xf]
  %v62 = vld [vmem:[%s55 + $0x18] sm:$0xf]
  %v63 = vld [vmem:[%s55 + $0x1c] sm:$0xf]
  %v64 = vld [vmem:[%s55 + $0x20] sm:$0xf]
  %v65 = vld [vmem:[%s55 + $0x24] sm:$0xf]
  %v66 = vld [vmem:[%s55 + $0x28] sm:$0xf]
  %v67 = vld [vmem:[%s55 + $0x2c] sm:$0xf]
  %v68 = vld [vmem:[%s55 + $0x30] sm:$0xf]
  %v69 = vld [vmem:[%s55 + $0x34] sm:$0xf]
  %v70 = vld [vmem:[%s55 + $0x38] sm:$0xf]
  %v71 = vld [vmem:[%s55 + $0x3c] sm:$0xf]
  %v72 = vld [vmem:[%s55 + $0x40] sm:$0xf]
  %v73 = vld [vmem:[%s55 + $0x44] sm:$0xf]
  %v74 = vld [vmem:[%s55 + $0x48] sm:$0xf]
  %v75 = vld [vmem:[%s55 + $0x4c] sm:$0xf]
  %v76 = vld [vmem:[%s55 + $0x50] sm:$0xf]
  %v77 = vld [vmem:[%s55 + $0x54] sm:$0xf]
  %v78 = vld [vmem:[%s55 + $0x58] sm:$0xf]
  %v79 = vld [vmem:[%s55 + $0x5c] sm:$0xf]
  %v80 = vld [vmem:[%s55 + $0x60] sm:$0xf]
  %v81 = vld [vmem:[%s55 + $0x64] sm:$0xf]
  %v82 = vld [vmem:[%s55 + $0x68] sm:$0xf]
  %v83 = vld [vmem:[%s55 + $0x6c] sm:$0xf]
  %v84 = vld [vmem:[%s55 + $0x70] sm:$0xf]
  %v85 = vld [vmem:[%s55 + $0x74] sm:$0xf]
  %v86 = vld [vmem:[%s55 + $0x78] sm:$0xf]
  %v87 = vld [vmem:[%s55 + $0x7c] sm:$0xf]
  %v88 = vld [vmem:[#allocation2] sm:$0xff]
  %v89 = vld [vmem:[#allocation2 + $0x8] sm:$0xff]
  %v90 = vld [vmem:[#allocation2 + $0x10] sm:$0xff]
  %v91 = vld [vmem:[#allocation2 + $0x18] sm:$0xff]
  %v92 = vld [vmem:[#allocation2 + $0x20] sm:$0xff]
  %v93 = vld [vmem:[#allocation2 + $0x28] sm:$0xff]
  %v94 = vld [vmem:[#allocation2 + $0x30] sm:$0xff]
  %v95 = vld [vmem:[#allocation2 + $0x38] sm:$0xff]
  %v96 = vld [vmem:[#allocation2 + $0x40] sm:$0xff]
  %v97 = vld [vmem:[#allocation2 + $0x48] sm:$0xff]
  %v98 = vld [vmem:[#allocation2 + $0x50] sm:$0xff]
  %v99 = vld [vmem:[#allocation2 + $0x58] sm:$0xff]
  %v100 = vld [vmem:[#allocation2 + $0x60] sm:$0xff]
  %v101 = vld [vmem:[#allocation2 + $0x68] sm:$0xff]
  %v102 = vld [vmem:[#allocation2 + $0x70] sm:$0xff]
  %v103 = vld [vmem:[#allocation2 + $0x78] sm:$0xff]
  %v104 = vld [vmem:[#allocation2 + $0x80] sm:$0xff]
  %v105 = vld [vmem:[#allocation2 + $0x88] sm:$0xff]
  %v106 = vld [vmem:[#allocation2 + $0x90] sm:$0xff]
  %v107 = vld [vmem:[#allocation2 + $0x98] sm:$0xff]
  %v108 = vld [vmem:[#allocation2 + $0xa0] sm:$0xff]
  %v109 = vld [vmem:[#allocation2 + $0xa8] sm:$0xff]
  %v110 = vld [vmem:[#allocation2 + $0xb0] sm:$0xff]
  %v111 = vld [vmem:[#allocation2 + $0xb8] sm:$0xff]
  %v112 = vld [vmem:[#allocation2 + $0xc0] sm:$0xff]
  %v113 = vld [vmem:[#allocation2 + $0xc8] sm:$0xff]
  %v114 = vld [vmem:[#allocation2 + $0xd0] sm:$0xff]
  %v115 = vld [vmem:[#allocation2 + $0xd8] sm:$0xff]
  %v116 = vld [vmem:[#allocation2 + $0xe0] sm:$0xff]
  %v117 = vld [vmem:[#allocation2 + $0xe8] sm:$0xff]
  %v118 = vld [vmem:[#allocation2 + $0xf0] sm:$0xff]
  %v119 = vld [vmem:[#allocation2 + $0xf8] sm:$0xff]
  %v120 = vld [vmem:[%s0] sm:$0xff]
  %v121 = vld [vmem:[%s0 + $0x8] sm:$0xff]
  %v122 = vld [vmem:[%s0 + $0x10] sm:$0xff]
  %v123 = vld [vmem:[%s0 + $0x18] sm:$0xff]
  %v124 = vld [vmem:[%s0 + $0x20] sm:$0xff]
  %v125 = vld [vmem:[%s0 + $0x28] sm:$0xff]
  %v126 = vld [vmem:[%s0 + $0x30] sm:$0xff]
  %v127 = vld [vmem:[%s0 + $0x38] sm:$0xff]
  %v128 = vld [vmem:[%s0 + $0x40] sm:$0xff]
  %v129 = vld [vmem:[%s0 + $0x48] sm:$0xff]
  %v130 = vld [vmem:[%s0 + $0x50] sm:$0xff]
  %v131 = vld [vmem:[%s0 + $0x58] sm:$0xff]
  %v132 = vld [vmem:[%s0 + $0x60] sm:$0xff]
  %v133 = vld [vmem:[%s0 + $0x68] sm:$0xff]
  %v134 = vld [vmem:[%s0 + $0x70] sm:$0xff]
  %v135 = vld [vmem:[%s0 + $0x78] sm:$0xff]
  %v136 = vld [vmem:[%s0 + $0x80] sm:$0xff]
  %v137 = vld [vmem:[%s0 + $0x88] sm:$0xff]
  %v138 = vld [vmem:[%s0 + $0x90] sm:$0xff]
  %v139 = vld [vmem:[%s0 + $0x98] sm:$0xff]
  %v140 = vld [vmem:[%s0 + $0xa0] sm:$0xff]
  %v141 = vld [vmem:[%s0 + $0xa8] sm:$0xff]
  %v142 = vld [vmem:[%s0 + $0xb0] sm:$0xff]
  %v143 = vld [vmem:[%s0 + $0xb8] sm:$0xff]
  %v144 = vld [vmem:[%s0 + $0xc0] sm:$0xff]
  %v145 = vld [vmem:[%s0 + $0xc8] sm:$0xff]
  %v146 = vld [vmem:[%s0 + $0xd0] sm:$0xff]
  %v147 = vld [vmem:[%s0 + $0xd8] sm:$0xff]
  %v148 = vld [vmem:[%s0 + $0xe0] sm:$0xff]
  %v149 = vld [vmem:[%s0 + $0xe8] sm:$0xff]
  %v150 = vld [vmem:[%s0 + $0xf0] sm:$0xff]
  %v151 = vld [vmem:[%s0 + $0xf8] sm:$0xff]
  %v184 = vunpack.c.l.b16 %v120
  %v185 = vunpack.c.h.b16 %v120
  %v186 = vunpack.c.l.b16 %v121
  %v187 = vunpack.c.h.b16 %v121
  %v188 = vunpack.c.l.b16 %v122
  %v189 = vunpack.c.h.b16 %v122
  %v190 = vunpack.c.l.b16 %v123
  %v191 = vunpack.c.h.b16 %v123
  %v192 = vunpack.c.l.b16 %v124
  %v193 = vunpack.c.h.b16 %v124
  %v194 = vunpack.c.l.b16 %v125
  %v195 = vunpack.c.h.b16 %v125
  %v196 = vunpack.c.l.b16 %v126
  %v197 = vunpack.c.h.b16 %v126
  %v198 = vunpack.c.l.b16 %v127
  %v199 = vunpack.c.h.b16 %v127
  %v200 = vunpack.c.l.b16 %v128
  %v201 = vunpack.c.h.b16 %v128
  %v202 = vunpack.c.l.b16 %v129
  %v203 = vunpack.c.h.b16 %v129
  %v204 = vunpack.c.l.b16 %v130
  %v205 = vunpack.c.h.b16 %v130
  %v206 = vunpack.c.l.b16 %v131
  %v207 = vunpack.c.h.b16 %v131
  %v208 = vunpack.c.l.b16 %v132
  %v209 = vunpack.c.h.b16 %v132
  %v210 = vunpack.c.l.b16 %v133
  %v211 = vunpack.c.h.b16 %v133
  %v212 = vunpack.c.l.b16 %v134
  %v213 = vunpack.c.h.b16 %v134
  %v214 = vunpack.c.l.b16 %v135
  %v215 = vunpack.c.h.b16 %v135
  %v216 = vunpack.c.l.b16 %v136
  %v217 = vunpack.c.h.b16 %v136
  %v218 = vunpack.c.l.b16 %v137
  %v219 = vunpack.c.h.b16 %v137
  %v220 = vunpack.c.l.b16 %v138
  %v221 = vunpack.c.h.b16 %v138
  %v222 = vunpack.c.l.b16 %v139
  %v223 = vunpack.c.h.b16 %v139
  %v224 = vunpack.c.l.b16 %v140
  %v225 = vunpack.c.h.b16 %v140
  %v226 = vunpack.c.l.b16 %v141
  %v227 = vunpack.c.h.b16 %v141
  %v228 = vunpack.c.l.b16 %v142
  %v229 = vunpack.c.h.b16 %v142
  %v230 = vunpack.c.l.b16 %v143
  %v231 = vunpack.c.h.b16 %v143
  %v232 = vunpack.c.l.b16 %v144
  %v233 = vunpack.c.h.b16 %v144
  %v234 = vunpack.c.l.b16 %v145
  %v235 = vunpack.c.h.b16 %v145
  %v236 = vunpack.c.l.b16 %v146
  %v237 = vunpack.c.h.b16 %v146
  %v238 = vunpack.c.l.b16 %v147
  %v239 = vunpack.c.h.b16 %v147
  %v240 = vunpack.c.l.b16 %v148
  %v241 = vunpack.c.h.b16 %v148
  %v242 = vunpack.c.l.b16 %v149
  %v243 = vunpack.c.h.b16 %v149
  %v244 = vunpack.c.l.b16 %v150
  %v245 = vunpack.c.h.b16 %v150
  %v246 = vunpack.c.l.b16 %v151
  %v247 = vunpack.c.h.b16 %v151
  %v248 = vpack.c.b16 %v186, %v184
  %v249 = vpack.c.b16 %v187, %v185
  %v250 = vpack.c.b16 %v190, %v188
  %v251 = vpack.c.b16 %v191, %v189
  %v252 = vpack.c.b16 %v194, %v192
  %v253 = vpack.c.b16 %v195, %v193
  %v254 = vpack.c.b16 %v198, %v196
  %v255 = vpack.c.b16 %v199, %v197
  %v256 = vpack.c.b16 %v202, %v200
  %v257 = vpack.c.b16 %v203, %v201
  %v258 = vpack.c.b16 %v206, %v204
  %v259 = vpack.c.b16 %v207, %v205
  %v260 = vpack.c.b16 %v210, %v208
  %v261 = vpack.c.b16 %v211, %v209
  %v262 = vpack.c.b16 %v214, %v212
  %v263 = vpack.c.b16 %v215, %v213
  %v264 = vpack.c.b16 %v218, %v216
  %v265 = vpack.c.b16 %v219, %v217
  %v266 = vpack.c.b16 %v222, %v220
  %v267 = vpack.c.b16 %v223, %v221
  %v268 = vpack.c.b16 %v226, %v224
  %v269 = vpack.c.b16 %v227, %v225
  %v270 = vpack.c.b16 %v230, %v228
  %v271 = vpack.c.b16 %v231, %v229
  %v272 = vpack.c.b16 %v234, %v232
  %v273 = vpack.c.b16 %v235, %v233
  %v274 = vpack.c.b16 %v238, %v236
  %v275 = vpack.c.b16 %v239, %v237
  %v276 = vpack.c.b16 %v242, %v240
  %v277 = vpack.c.b16 %v243, %v241
  %v278 = vpack.c.b16 %v246, %v244
  %v279 = vpack.c.b16 %v247, %v245
  %v344 = vunpack.c.l.b16 %v56
  %v345 = vunpack.c.l.b16 %v57
  %v346 = vunpack.c.l.b16 %v58
  %v347 = vunpack.c.l.b16 %v59
  %v348 = vunpack.c.l.b16 %v60
  %v349 = vunpack.c.l.b16 %v61
  %v350 = vunpack.c.l.b16 %v62
  %v351 = vunpack.c.l.b16 %v63
  %v352 = vunpack.c.l.b16 %v64
  %v353 = vunpack.c.l.b16 %v65
  %v354 = vunpack.c.l.b16 %v66
  %v355 = vunpack.c.l.b16 %v67
  %v356 = vunpack.c.l.b16 %v68
  %v357 = vunpack.c.l.b16 %v69
  %v358 = vunpack.c.l.b16 %v70
  %v359 = vunpack.c.l.b16 %v71
  %v360 = vunpack.c.l.b16 %v72
  %v361 = vunpack.c.l.b16 %v73
  %v362 = vunpack.c.l.b16 %v74
  %v363 = vunpack.c.l.b16 %v75
  %v364 = vunpack.c.l.b16 %v76
  %v365 = vunpack.c.l.b16 %v77
  %v366 = vunpack.c.l.b16 %v78
  %v367 = vunpack.c.l.b16 %v79
  %v368 = vunpack.c.l.b16 %v80
  %v369 = vunpack.c.l.b16 %v81
  %v370 = vunpack.c.l.b16 %v82
  %v371 = vunpack.c.l.b16 %v83
  %v372 = vunpack.c.l.b16 %v84
  %v373 = vunpack.c.l.b16 %v85
  %v374 = vunpack.c.l.b16 %v86
  %v375 = vunpack.c.l.b16 %v87
  %v376 = vpack.c.b16 %v345, %v344
  %v377 = vpack.c.b16 %v347, %v346
  %v378 = vpack.c.b16 %v349, %v348
  %v379 = vpack.c.b16 %v351, %v350
  %v380 = vpack.c.b16 %v353, %v352
  %v381 = vpack.c.b16 %v355, %v354
  %v382 = vpack.c.b16 %v357, %v356
  %v383 = vpack.c.b16 %v359, %v358
  %v384 = vpack.c.b16 %v361, %v360
  %v385 = vpack.c.b16 %v363, %v362
  %v386 = vpack.c.b16 %v365, %v364
  %v387 = vpack.c.b16 %v367, %v366
  %v388 = vpack.c.b16 %v369, %v368
  %v389 = vpack.c.b16 %v371, %v370
  %v390 = vpack.c.b16 %v373, %v372
  %v391 = vpack.c.b16 %v375, %v374
  %408 = vmatprep.subr.bf16.mxu0 0
  %409 = vmatpush1.bf16.msra.mxu0 %v376
  %410 = vmatprep.subr.bf16.mxu0 0
  %411 = vmatpush1.bf16.msra.mxu0 %v377
  %412 = vmatprep.subr.bf16.mxu0 0
  %413 = vmatpush1.bf16.msra.mxu0 %v378
  %414 = vmatprep.subr.bf16.mxu0 0
  %415 = vmatpush1.bf16.msra.mxu0 %v379
  %416 = vmatprep.subr.bf16.mxu0 0
  %417 = vmatpush1.bf16.msra.mxu0 %v380
  %418 = vmatprep.subr.bf16.mxu0 0
  %419 = vmatpush1.bf16.msra.mxu0 %v381
  %420 = vmatprep.subr.bf16.mxu0 0
  %421 = vmatpush1.bf16.msra.mxu0 %v382
  %422 = vmatprep.subr.bf16.mxu0 0
  %423 = vmatpush1.bf16.msra.mxu0 %v383
  %424 = vmatprep.subr.bf16.mxu0 0
  %425 = vmatpush1.bf16.msra.mxu0 %v384
  %426 = vmatprep.subr.bf16.mxu0 0
  %427 = vmatpush1.bf16.msra.mxu0 %v385
  %428 = vmatprep.subr.bf16.mxu0 0
  %429 = vmatpush1.bf16.msra.mxu0 %v386
  %430 = vmatprep.subr.bf16.mxu0 0
  %431 = vmatpush1.bf16.msra.mxu0 %v387
  %432 = vmatprep.subr.bf16.mxu0 0
  %433 = vmatpush1.bf16.msra.mxu0 %v388
  %434 = vmatprep.subr.bf16.mxu0 0
  %435 = vmatpush1.bf16.msra.mxu0 %v389
  %436 = vmatprep.subr.bf16.mxu0 0
  %437 = vmatpush1.bf16.msra.mxu0 %v390
  %438 = vmatprep.subr.bf16.mxu0 0
  %439 = vmatpush1.bf16.msra.mxu0 %v391
  %440 = vmatprep.mubr.bf16.mxu0 %v249
  %441 = vmatmul.mubr.bf16.gmra.mrb[0].mxu0 %v248
  %v442 = vpop.f32.mrb[0].mxu0
  %v443 = vadd.f32 0.0, %v442
  %v444 = vpop.f32.mrb[0].mxu0
  %v445 = vpop.f32.mrb[0].mxu0
  %v446 = vadd.f32 0.0, %v445
  %v447 = vpop.f32.mrb[0].mxu0
  %448 = vmatprep.mubr.bf16.mxu0 %v251
  %449 = vmatmul.mubr.bf16.gmra.mrb[0].mxu0 %v250
  %v450 = vpop.f32.mrb[0].mxu0
  %v451 = vadd.f32 0.0, %v450
  %v452 = vpop.f32.mrb[0].mxu0
  %v453 = vpop.f32.mrb[0].mxu0
  %v454 = vadd.f32 0.0, %v453
  %v455 = vpop.f32.mrb[0].mxu0
  %456 = vmatprep.mubr.bf16.mxu0 %v253
  %457 = vmatmul.mubr.bf16.gmra.mrb[0].mxu0 %v252
  %v458 = vpop.f32.mrb[0].mxu0
  %v459 = vadd.f32 0.0, %v458
  %v460 = vpop.f32.mrb[0].mxu0
  %v461 = vpop.f32.mrb[0].mxu0
  %v462 = vadd.f32 0.0, %v461
  %v463 = vpop.f32.mrb[0].mxu0
  %464 = vmatprep.mubr.bf16.mxu0 %v255
  %465 = vmatmul.mubr.bf16.gmra.mrb[0].mxu0 %v254
  %v466 = vpop.f32.mrb[0].mxu0
  %v467 = vadd.f32 0.0, %v466
  %v468 = vpop.f32.mrb[0].mxu0
  %v469 = vpop.f32.mrb[0].mxu0
  %v470 = vadd.f32 0.0, %v469
  %v471 = vpop.f32.mrb[0].mxu0
  %472 = vmatprep.mubr.bf16.mxu0 %v257
  %473 = vmatmul.mubr.bf16.gmra.mrb[0].mxu0 %v256
  %v474 = vpop.f32.mrb[0].mxu0
  %v475 = vadd.f32 0.0, %v474
  %v476 = vpop.f32.mrb[0].mxu0
  %v477 = vpop.f32.mrb[0].mxu0
  %v478 = vadd.f32 0.0, %v477
  %v479 = vpop.f32.mrb[0].mxu0
  %480 = vmatprep.mubr.bf16.mxu0 %v259
  %481 = vmatmul.mubr.bf16.gmra.mrb[0].mxu0 %v258
  %v482 = vpop.f32.mrb[0].mxu0
  %v483 = vadd.f32 0.0, %v482
  %v484 = vpop.f32.mrb[0].mxu0
  %v485 = vpop.f32.mrb[0].mxu0
  %v486 = vadd.f32 0.0, %v485
  %v487 = vpop.f32.mrb[0].mxu0
  %488 = vmatprep.mubr.bf16.mxu0 %v261
  %489 = vmatmul.mubr.bf16.gmra.mrb[0].mxu0 %v260
  %v490 = vpop.f32.mrb[0].mxu0
  %v491 = vadd.f32 0.0, %v490
  %v492 = vpop.f32.mrb[0].mxu0
  %v493 = vpop.f32.mrb[0].mxu0
  %v494 = vadd.f32 0.0, %v493
  %v495 = vpop.f32.mrb[0].mxu0
  %496 = vmatprep.mubr.bf16.mxu0 %v263
  %497 = vmatmul.mubr.bf16.gmra.mrb[0].mxu0 %v262
  %v498 = vpop.f32.mrb[0].mxu0
  %v499 = vadd.f32 0.0, %v498
  %v500 = vpop.f32.mrb[0].mxu0
  %v501 = vpop.f32.mrb[0].mxu0
  %v502 = vadd.f32 0.0, %v501
  %v503 = vpop.f32.mrb[0].mxu0
  %504 = vmatprep.mubr.bf16.mxu0 %v265
  %505 = vmatmul.mubr.bf16.gmra.mrb[0].mxu0 %v264
  %v506 = vpop.f32.mrb[0].mxu0
  %v507 = vadd.f32 0.0, %v506
  %v508 = vpop.f32.mrb[0].mxu0
  %v509 = vpop.f32.mrb[0].mxu0
  %v510 = vadd.f32 0.0, %v509
  %v511 = vpop.f32.mrb[0].mxu0
  %512 = vmatprep.mubr.bf16.mxu0 %v267
  %513 = vmatmul.mubr.bf16.gmra.mrb[0].mxu0 %v266
  %v514 = vpop.f32.mrb[0].mxu0
  %v515 = vadd.f32 0.0, %v514
  %v516 = vpop.f32.mrb[0].mxu0
  %v517 = vpop.f32.mrb[0].mxu0
  %v518 = vadd.f32 0.0, %v517
  %v519 = vpop.f32.mrb[0].mxu0
  %520 = vmatprep.mubr.bf16.mxu0 %v269
  %521 = vmatmul.mubr.bf16.gmra.mrb[0].mxu0 %v268
  %v522 = vpop.f32.mrb[0].mxu0
  %v523 = vadd.f32 0.0, %v522
  %v524 = vpop.f32.mrb[0].mxu0
  %v525 = vpop.f32.mrb[0].mxu0
  %v526 = vadd.f32 0.0, %v525
  %v527 = vpop.f32.mrb[0].mxu0
  %528 = vmatprep.mubr.bf16.mxu0 %v271
  %529 = vmatmul.mubr.bf16.gmra.mrb[0].mxu0 %v270
  %v530 = vpop.f32.mrb[0].mxu0
  %v531 = vadd.f32 0.0, %v530
  %v532 = vpop.f32.mrb[0].mxu0
  %v533 = vpop.f32.mrb[0].mxu0
  %v534 = vadd.f32 0.0, %v533
  %v535 = vpop.f32.mrb[0].mxu0
  %536 = vmatprep.mubr.bf16.mxu0 %v273
  %537 = vmatmul.mubr.bf16.gmra.mrb[0].mxu0 %v272
  %v538 = vpop.f32.mrb[0].mxu0
  %v539 = vadd.f32 0.0, %v538
  %v540 = vpop.f32.mrb[0].mxu0
  %v541 = vpop.f32.mrb[0].mxu0
  %v542 = vadd.f32 0.0, %v541
  %v543 = vpop.f32.mrb[0].mxu0
  %544 = vmatprep.mubr.bf16.mxu0 %v275
  %545 = vmatmul.mubr.bf16.gmra.mrb[0].mxu0 %v274
  %v546 = vpop.f32.mrb[0].mxu0
  %v547 = vadd.f32 0.0, %v546
  %v548 = vpop.f32.mrb[0].mxu0
  %v549 = vpop.f32.mrb[0].mxu0
  %v550 = vadd.f32 0.0, %v549
  %v551 = vpop.f32.mrb[0].mxu0
  %552 = vmatprep.mubr.bf16.mxu0 %v277
  %553 = vmatmul.mubr.bf16.gmra.mrb[0].mxu0 %v276
  %v554 = vpop.f32.mrb[0].mxu0
  %v555 = vadd.f32 0.0, %v554
  %v556 = vpop.f32.mrb[0].mxu0
  %v557 = vpop.f32.mrb[0].mxu0
  %v558 = vadd.f32 0.0, %v557
  %v559 = vpop.f32.mrb[0].mxu0
  %560 = vmatprep.mubr.bf16.mxu0 %v279
  %561 = vmatmul.mubr.bf16.gmra.mrb[0].mxu0 %v278
  %v562 = vpop.f32.mrb[0].mxu0
  %v563 = vadd.f32 0.0, %v562
  %v564 = vpop.f32.mrb[0].mxu0
  %v565 = vpop.f32.mrb[0].mxu0
  %v566 = vadd.f32 0.0, %v565
  %v567 = vpop.f32.mrb[0].mxu0
  %568 = vdwg.mxu0
  %v569 = vadd.f32 %v88, %v443
  %v570 = vadd.f32 %v89, %v446
  %v571 = vadd.f32 %v90, %v451
  %v572 = vadd.f32 %v91, %v454
  %v573 = vadd.f32 %v92, %v459
  %v574 = vadd.f32 %v93, %v462
  %v575 = vadd.f32 %v94, %v467
  %v576 = vadd.f32 %v95, %v470
  %v577 = vadd.f32 %v96, %v475
  %v578 = vadd.f32 %v97, %v478
  %v579 = vadd.f32 %v98, %v483
  %v580 = vadd.f32 %v99, %v486
  %v581 = vadd.f32 %v100, %v491
  %v582 = vadd.f32 %v101, %v494
  %v583 = vadd.f32 %v102, %v499
  %v584 = vadd.f32 %v103, %v502
  %v585 = vadd.f32 %v104, %v507
  %v586 = vadd.f32 %v105, %v510
  %v587 = vadd.f32 %v106, %v515
  %v588 = vadd.f32 %v107, %v518
  %v589 = vadd.f32 %v108, %v523
  %v590 = vadd.f32 %v109, %v526
  %v591 = vadd.f32 %v110, %v531
  %v592 = vadd.f32 %v111, %v534
  %v593 = vadd.f32 %v112, %v539
  %v594 = vadd.f32 %v113, %v542
  %v595 = vadd.f32 %v114, %v547
  %v596 = vadd.f32 %v115, %v550
  %v597 = vadd.f32 %v116, %v555
  %v598 = vadd.f32 %v117, %v558
  %v599 = vadd.f32 %v118, %v563
  %v600 = vadd.f32 %v119, %v566
  %601 = vst [vmem:[#allocation2] sm:$0xff] %v569
  %602 = vst [vmem:[#allocation2 + $0x8] sm:$0xff] %v570
  %603 = vst [vmem:[#allocation2 + $0x10] sm:$0xff] %v571
  %604 = vst [vmem:[#allocation2 + $0x18] sm:$0xff] %v572
  %605 = vst [vmem:[#allocation2 + $0x20] sm:$0xff] %v573
  %606 = vst [vmem:[#allocation2 + $0x28] sm:$0xff] %v574
  %607 = vst [vmem:[#allocation2 + $0x30] sm:$0xff] %v575
  %608 = vst [vmem:[#allocation2 + $0x38] sm:$0xff] %v576
  %609 = vst [vmem:[#allocation2 + $0x40] sm:$0xff] %v577
  %610 = vst [vmem:[#allocation2 + $0x48] sm:$0xff] %v578
  %611 = vst [vmem:[#allocation2 + $0x50] sm:$0xff] %v579
  %612 = vst [vmem:[#allocation2 + $0x58] sm:$0xff] %v580
  %613 = vst [vmem:[#allocation2 + $0x60] sm:$0xff] %v581
  %614 = vst [vmem:[#allocation2 + $0x68] sm:$0xff] %v582
  %615 = vst [vmem:[#allocation2 + $0x70] sm:$0xff] %v583
  %616 = vst [vmem:[#allocation2 + $0x78] sm:$0xff] %v584
  %617 = vst [vmem:[#allocation2 + $0x80] sm:$0xff] %v585
  %618 = vst [vmem:[#allocation2 + $0x88] sm:$0xff] %v586
  %619 = vst [vmem:[#allocation2 + $0x90] sm:$0xff] %v587
  %620 = vst [vmem:[#allocation2 + $0x98] sm:$0xff] %v588
  %621 = vst [vmem:[#allocation2 + $0xa0] sm:$0xff] %v589
  %622 = vst [vmem:[#allocation2 + $0xa8] sm:$0xff] %v590
  %623 = vst [vmem:[#allocation2 + $0xb0] sm:$0xff] %v591
  %624 = vst [vmem:[#allocation2 + $0xb8] sm:$0xff] %v592
  %625 = vst [vmem:[#allocation2 + $0xc0] sm:$0xff] %v593
  %626 = vst [vmem:[#allocation2 + $0xc8] sm:$0xff] %v594
  %627 = vst [vmem:[#allocation2 + $0xd0] sm:$0xff] %v595
  %628 = vst [vmem:[#allocation2 + $0xd8] sm:$0xff] %v596
  %629 = vst [vmem:[#allocation2 + $0xe0] sm:$0xff] %v597
  %630 = vst [vmem:[#allocation2 + $0xe8] sm:$0xff] %v598
  %631 = vst [vmem:[#allocation2 + $0xf0] sm:$0xff] %v599
  %632 = vst [vmem:[#allocation2 + $0xf8] sm:$0xff] %v600
  // Predicated region
  $region18: #{gcn_forward.5} parent=0 // pred_check
    %p633 = pneg %p15
  $region19: #{gcn_forward.5} parent=0 // pred_check_branch
    %635 = sbr.rel (%p633) target = $region21
  $region20: #{gcn_forward.5} parent=0 // pred_region
    %v636 = vld [vmem:[#allocation2] sm:$0xff]
    %v637 = vld [vmem:[#allocation2 + $0x8] sm:$0xff]
    %v638 = vld [vmem:[#allocation2 + $0x10] sm:$0xff]
    %v639 = vld [vmem:[#allocation2 + $0x18] sm:$0xff]
    %v640 = vld [vmem:[#allocation2 + $0x20] sm:$0xff]
    %v641 = vld [vmem:[#allocation2 + $0x28] sm:$0xff]
    %v642 = vld [vmem:[#allocation2 + $0x30] sm:$0xff]
    %v643 = vld [vmem:[#allocation2 + $0x38] sm:$0xff]
    %v644 = vld [vmem:[#allocation2 + $0x40] sm:$0xff]
    %v645 = vld [vmem:[#allocation2 + $0x48] sm:$0xff]
    %v646 = vld [vmem:[#allocation2 + $0x50] sm:$0xff]
    %v647 = vld [vmem:[#allocation2 + $0x58] sm:$0xff]
    %v648 = vld [vmem:[#allocation2 + $0x60] sm:$0xff]
    %v649 = vld [vmem:[#allocation2 + $0x68] sm:$0xff]
    %v650 = vld [vmem:[#allocation2 + $0x70] sm:$0xff]
    %v651 = vld [vmem:[#allocation2 + $0x78] sm:$0xff]
    %v652 = vld [vmem:[#allocation2 + $0x80] sm:$0xff]
    %v653 = vld [vmem:[#allocation2 + $0x88] sm:$0xff]
    %v654 = vld [vmem:[#allocation2 + $0x90] sm:$0xff]
    %v655 = vld [vmem:[#allocation2 + $0x98] sm:$0xff]
    %v656 = vld [vmem:[#allocation2 + $0xa0] sm:$0xff]
    %v657 = vld [vmem:[#allocation2 + $0xa8] sm:$0xff]
    %v658 = vld [vmem:[#allocation2 + $0xb0] sm:$0xff]
    %v659 = vld [vmem:[#allocation2 + $0xb8] sm:$0xff]
    %v660 = vld [vmem:[#allocation2 + $0xc0] sm:$0xff]
    %v661 = vld [vmem:[#allocation2 + $0xc8] sm:$0xff]
    %v662 = vld [vmem:[#allocation2 + $0xd0] sm:$0xff]
    %v663 = vld [vmem:[#allocation2 + $0xd8] sm:$0xff]
    %v664 = vld [vmem:[#allocation2 + $0xe0] sm:$0xff]
    %v665 = vld [vmem:[#allocation2 + $0xe8] sm:$0xff]
    %v666 = vld [vmem:[#allocation2 + $0xf0] sm:$0xff]
    %v667 = vld [vmem:[#allocation2 + $0xf8] sm:$0xff]
    %v668 = vld [vmem:[%s2] sm:$0x1]
    %v670 = vlaneseq
    %v671 = vshrl.u32 %v670, 7
    %v672 = vsub.s32 0, %v671
    %v673 = vrot.slane %v668, %v672
    %v675 = vadd.f32 %v636, %v673
    %v676 = vadd.f32 %v637, %v673
    %v677 = vadd.f32 %v638, %v673
    %v678 = vadd.f32 %v639, %v673
    %v679 = vadd.f32 %v640, %v673
    %v680 = vadd.f32 %v641, %v673
    %v681 = vadd.f32 %v642, %v673
    %v682 = vadd.f32 %v643, %v673
    %v683 = vadd.f32 %v644, %v673
    %v684 = vadd.f32 %v645, %v673
    %v685 = vadd.f32 %v646, %v673
    %v686 = vadd.f32 %v647, %v673
    %v687 = vadd.f32 %v648, %v673
    %v688 = vadd.f32 %v649, %v673
    %v689 = vadd.f32 %v650, %v673
    %v690 = vadd.f32 %v651, %v673
    %v691 = vadd.f32 %v652, %v673
    %v692 = vadd.f32 %v653, %v673
    %v693 = vadd.f32 %v654, %v673
    %v694 = vadd.f32 %v655, %v673
    %v695 = vadd.f32 %v656, %v673
    %v696 = vadd.f32 %v657, %v673
    %v697 = vadd.f32 %v658, %v673
    %v698 = vadd.f32 %v659, %v673
    %v699 = vadd.f32 %v660, %v673
    %v700 = vadd.f32 %v661, %v673
    %v701 = vadd.f32 %v662, %v673
    %v702 = vadd.f32 %v663, %v673
    %v703 = vadd.f32 %v664, %v673
    %v704 = vadd.f32 %v665, %v673
    %v705 = vadd.f32 %v666, %v673
    %v706 = vadd.f32 %v667, %v673
    %707 = vmax.xlane.f32.xlu0 %v675
    %v708 = vpop.xlane.xlu0 %707
    %709 = vmax.xlane.f32.xlu0 %v676
    %v710 = vpop.xlane.xlu0 %709
    %711 = vmax.xlane.f32.xlu0 %v677
    %v712 = vpop.xlane.xlu0 %711
    %713 = vmax.xlane.f32.xlu0 %v678
    %v714 = vpop.xlane.xlu0 %713
    %715 = vmax.xlane.f32.xlu0 %v679
    %v716 = vpop.xlane.xlu0 %715
    %717 = vmax.xlane.f32.xlu0 %v680
    %v718 = vpop.xlane.xlu0 %717
    %719 = vmax.xlane.f32.xlu0 %v681
    %v720 = vpop.xlane.xlu0 %719
    %721 = vmax.xlane.f32.xlu0 %v682
    %v722 = vpop.xlane.xlu0 %721
    %723 = vmax.xlane.f32.xlu0 %v683
    %v724 = vpop.xlane.xlu0 %723
    %725 = vmax.xlane.f32.xlu0 %v684
    %v726 = vpop.xlane.xlu0 %725
    %727 = vmax.xlane.f32.xlu0 %v685
    %v728 = vpop.xlane.xlu0 %727
    %729 = vmax.xlane.f32.xlu0 %v686
    %v730 = vpop.xlane.xlu0 %729
    %731 = vmax.xlane.f32.xlu0 %v687
    %v732 = vpop.xlane.xlu0 %731
    %733 = vmax.xlane.f32.xlu0 %v688
    %v734 = vpop.xlane.xlu0 %733
    %735 = vmax.xlane.f32.xlu0 %v689
    %v736 = vpop.xlane.xlu0 %735
    %737 = vmax.xlane.f32.xlu0 %v690
    %v738 = vpop.xlane.xlu0 %737
    %739 = vmax.xlane.f32.xlu0 %v691
    %v740 = vpop.xlane.xlu0 %739
    %741 = vmax.xlane.f32.xlu0 %v692
    %v742 = vpop.xlane.xlu0 %741
    %743 = vmax.xlane.f32.xlu0 %v693
    %v744 = vpop.xlane.xlu0 %743
    %745 = vmax.xlane.f32.xlu0 %v694
    %v746 = vpop.xlane.xlu0 %745
    %747 = vmax.xlane.f32.xlu0 %v695
    %v748 = vpop.xlane.xlu0 %747
    %749 = vmax.xlane.f32.xlu0 %v696
    %v750 = vpop.xlane.xlu0 %749
    %751 = vmax.xlane.f32.xlu0 %v697
    %v752 = vpop.xlane.xlu0 %751
    %753 = vmax.xlane.f32.xlu0 %v698
    %v754 = vpop.xlane.xlu0 %753
    %755 = vmax.xlane.f32.xlu0 %v699
    %v756 = vpop.xlane.xlu0 %755
    %757 = vmax.xlane.f32.xlu0 %v700
    %v758 = vpop.xlane.xlu0 %757
    %759 = vmax.xlane.f32.xlu0 %v701
    %v760 = vpop.xlane.xlu0 %759
    %761 = vmax.xlane.f32.xlu0 %v702
    %v762 = vpop.xlane.xlu0 %761
    %763 = vmax.xlane.f32.xlu0 %v703
    %v764 = vpop.xlane.xlu0 %763
    %765 = vmax.xlane.f32.xlu0 %v704
    %v766 = vpop.xlane.xlu0 %765
    %767 = vmax.xlane.f32.xlu0 %v705
    %v768 = vpop.xlane.xlu0 %767
    %769 = vmax.xlane.f32.xlu0 %v706
    %v770 = vpop.xlane.xlu0 %769
    %v771 = vsub.f32 %v675, %v708
    %v772 = vsub.f32 %v676, %v710
    %v773 = vsub.f32 %v677, %v712
    %v774 = vsub.f32 %v678, %v714
    %v775 = vsub.f32 %v679, %v716
    %v776 = vsub.f32 %v680, %v718
    %v777 = vsub.f32 %v681, %v720
    %v778 = vsub.f32 %v682, %v722
    %v779 = vsub.f32 %v683, %v724
    %v780 = vsub.f32 %v684, %v726
    %v781 = vsub.f32 %v685, %v728
    %v782 = vsub.f32 %v686, %v730
    %v783 = vsub.f32 %v687, %v732
    %v784 = vsub.f32 %v688, %v734
    %v785 = vsub.f32 %v689, %v736
    %v786 = vsub.f32 %v690, %v738
    %v787 = vsub.f32 %v691, %v740
    %v788 = vsub.f32 %v692, %v742
    %v789 = vsub.f32 %v693, %v744
    %v790 = vsub.f32 %v694, %v746
    %v791 = vsub.f32 %v695, %v748
    %v792 = vsub.f32 %v696, %v750
    %v793 = vsub.f32 %v697, %v752
    %v794 = vsub.f32 %v698, %v754
    %v795 = vsub.f32 %v699, %v756
    %v796 = vsub.f32 %v700, %v758
    %v797 = vsub.f32 %v701, %v760
    %v798 = vsub.f32 %v702, %v762
    %v799 = vsub.f32 %v703, %v764
    %v800 = vsub.f32 %v704, %v766
    %v801 = vsub.f32 %v705, %v768
    %v802 = vsub.f32 %v706, %v770
    %v803 = vmul.f32 %v771, 1.442695
    %v804 = vpow.pop %v803
    %v805 = vmul.f32 %v772, 1.442695
    %v806 = vpow.pop %v805
    %v807 = vmul.f32 %v773, 1.442695
    %v808 = vpow.pop %v807
    %v809 = vmul.f32 %v774, 1.442695
    %v810 = vpow.pop %v809
    %v811 = vmul.f32 %v775, 1.442695
    %v812 = vpow.pop %v811
    %v813 = vmul.f32 %v776, 1.442695
    %v814 = vpow.pop %v813
    %v815 = vmul.f32 %v777, 1.442695
    %v816 = vpow.pop %v815
    %v817 = vmul.f32 %v778, 1.442695
    %v818 = vpow.pop %v817
    %v819 = vmul.f32 %v779, 1.442695
    %v820 = vpow.pop %v819
    %v821 = vmul.f32 %v780, 1.442695
    %v822 = vpow.pop %v821
    %v823 = vmul.f32 %v781, 1.442695
    %v824 = vpow.pop %v823
    %v825 = vmul.f32 %v782, 1.442695
    %v826 = vpow.pop %v825
    %v827 = vmul.f32 %v783, 1.442695
    %v828 = vpow.pop %v827
    %v829 = vmul.f32 %v784, 1.442695
    %v830 = vpow.pop %v829
    %v831 = vmul.f32 %v785, 1.442695
    %v832 = vpow.pop %v831
    %v833 = vmul.f32 %v786, 1.442695
    %v834 = vpow.pop %v833
    %v835 = vmul.f32 %v787, 1.442695
    %v836 = vpow.pop %v835
    %v837 = vmul.f32 %v788, 1.442695
    %v838 = vpow.pop %v837
    %v839 = vmul.f32 %v789, 1.442695
    %v840 = vpow.pop %v839
    %v841 = vmul.f32 %v790, 1.442695
    %v842 = vpow.pop %v841
    %v843 = vmul.f32 %v791, 1.442695
    %v844 = vpow.pop %v843
    %v845 = vmul.f32 %v792, 1.442695
    %v846 = vpow.pop %v845
    %v847 = vmul.f32 %v793, 1.442695
    %v848 = vpow.pop %v847
    %v849 = vmul.f32 %v794, 1.442695
    %v850 = vpow.pop %v849
    %v851 = vmul.f32 %v795, 1.442695
    %v852 = vpow.pop %v851
    %v853 = vmul.f32 %v796, 1.442695
    %v854 = vpow.pop %v853
    %v855 = vmul.f32 %v797, 1.442695
    %v856 = vpow.pop %v855
    %v857 = vmul.f32 %v798, 1.442695
    %v858 = vpow.pop %v857
    %v859 = vmul.f32 %v799, 1.442695
    %v860 = vpow.pop %v859
    %v861 = vmul.f32 %v800, 1.442695
    %v862 = vpow.pop %v861
    %v863 = vmul.f32 %v801, 1.442695
    %v864 = vpow.pop %v863
    %v865 = vmul.f32 %v802, 1.442695
    %v866 = vpow.pop %v865
    %867 = vadd.xlane.f32.xlu0 %v804
    %v868 = vpop.xlane.xlu0 %867
    %869 = vadd.xlane.f32.xlu0 %v806
    %v870 = vpop.xlane.xlu0 %869
    %871 = vadd.xlane.f32.xlu0 %v808
    %v872 = vpop.xlane.xlu0 %871
    %873 = vadd.xlane.f32.xlu0 %v810
    %v874 = vpop.xlane.xlu0 %873
    %875 = vadd.xlane.f32.xlu0 %v812
    %v876 = vpop.xlane.xlu0 %875
    %877 = vadd.xlane.f32.xlu0 %v814
    %v878 = vpop.xlane.xlu0 %877
    %879 = vadd.xlane.f32.xlu0 %v816
    %v880 = vpop.xlane.xlu0 %879
    %881 = vadd.xlane.f32.xlu0 %v818
    %v882 = vpop.xlane.xlu0 %881
    %883 = vadd.xlane.f32.xlu0 %v820
    %v884 = vpop.xlane.xlu0 %883
    %885 = vadd.xlane.f32.xlu0 %v822
    %v886 = vpop.xlane.xlu0 %885
    %887 = vadd.xlane.f32.xlu0 %v824
    %v888 = vpop.xlane.xlu0 %887
    %889 = vadd.xlane.f32.xlu0 %v826
    %v890 = vpop.xlane.xlu0 %889
    %891 = vadd.xlane.f32.xlu0 %v828
    %v892 = vpop.xlane.xlu0 %891
    %893 = vadd.xlane.f32.xlu0 %v830
    %v894 = vpop.xlane.xlu0 %893
    %895 = vadd.xlane.f32.xlu0 %v832
    %v896 = vpop.xlane.xlu0 %895
    %897 = vadd.xlane.f32.xlu0 %v834
    %v898 = vpop.xlane.xlu0 %897
    %899 = vadd.xlane.f32.xlu0 %v836
    %v900 = vpop.xlane.xlu0 %899
    %901 = vadd.xlane.f32.xlu0 %v838
    %v902 = vpop.xlane.xlu0 %901
    %903 = vadd.xlane.f32.xlu0 %v840
    %v904 = vpop.xlane.xlu0 %903
    %905 = vadd.xlane.f32.xlu0 %v842
    %v906 = vpop.xlane.xlu0 %905
    %907 = vadd.xlane.f32.xlu0 %v844
    %v908 = vpop.xlane.xlu0 %907
    %909 = vadd.xlane.f32.xlu0 %v846
    %v910 = vpop.xlane.xlu0 %909
    %911 = vadd.xlane.f32.xlu0 %v848
    %v912 = vpop.xlane.xlu0 %911
    %913 = vadd.xlane.f32.xlu0 %v850
    %v914 = vpop.xlane.xlu0 %913
    %915 = vadd.xlane.f32.xlu0 %v852
    %v916 = vpop.xlane.xlu0 %915
    %917 = vadd.xlane.f32.xlu0 %v854
    %v918 = vpop.xlane.xlu0 %917
    %919 = vadd.xlane.f32.xlu0 %v856
    %v920 = vpop.xlane.xlu0 %919
    %921 = vadd.xlane.f32.xlu0 %v858
    %v922 = vpop.xlane.xlu0 %921
    %923 = vadd.xlane.f32.xlu0 %v860
    %v924 = vpop.xlane.xlu0 %923
    %925 = vadd.xlane.f32.xlu0 %v862
    %v926 = vpop.xlane.xlu0 %925
    %927 = vadd.xlane.f32.xlu0 %v864
    %v928 = vpop.xlane.xlu0 %927
    %929 = vadd.xlane.f32.xlu0 %v866
    %v930 = vpop.xlane.xlu0 %929
    %v931 = vlog2.pop %v868
    %v932 = vmul.f32 %v931, 0.6931472
    %v933 = vlog2.pop %v870
    %v934 = vmul.f32 %v933, 0.6931472
    %v935 = vlog2.pop %v872
    %v936 = vmul.f32 %v935, 0.6931472
    %v937 = vlog2.pop %v874
    %v938 = vmul.f32 %v937, 0.6931472
    %v939 = vlog2.pop %v876
    %v940 = vmul.f32 %v939, 0.6931472
    %v941 = vlog2.pop %v878
    %v942 = vmul.f32 %v941, 0.6931472
    %v943 = vlog2.pop %v880
    %v944 = vmul.f32 %v943, 0.6931472
    %v945 = vlog2.pop %v882
    %v946 = vmul.f32 %v945, 0.6931472
    %v947 = vlog2.pop %v884
    %v948 = vmul.f32 %v947, 0.6931472
    %v949 = vlog2.pop %v886
    %v950 = vmul.f32 %v949, 0.6931472
    %v951 = vlog2.pop %v888
    %v952 = vmul.f32 %v951, 0.6931472
    %v953 = vlog2.pop %v890
    %v954 = vmul.f32 %v953, 0.6931472
    %v955 = vlog2.pop %v892
    %v956 = vmul.f32 %v955, 0.6931472
    %v957 = vlog2.pop %v894
    %v958 = vmul.f32 %v957, 0.6931472
    %v959 = vlog2.pop %v896
    %v960 = vmul.f32 %v959, 0.6931472
    %v961 = vlog2.pop %v898
    %v962 = vmul.f32 %v961, 0.6931472
    %v963 = vlog2.pop %v900
    %v964 = vmul.f32 %v963, 0.6931472
    %v965 = vlog2.pop %v902
    %v966 = vmul.f32 %v965, 0.6931472
    %v967 = vlog2.pop %v904
    %v968 = vmul.f32 %v967, 0.6931472
    %v969 = vlog2.pop %v906
    %v970 = vmul.f32 %v969, 0.6931472
    %v971 = vlog2.pop %v908
    %v972 = vmul.f32 %v971, 0.6931472
    %v973 = vlog2.pop %v910
    %v974 = vmul.f32 %v973, 0.6931472
    %v975 = vlog2.pop %v912
    %v976 = vmul.f32 %v975, 0.6931472
    %v977 = vlog2.pop %v914
    %v978 = vmul.f32 %v977, 0.6931472
    %v979 = vlog2.pop %v916
    %v980 = vmul.f32 %v979, 0.6931472
    %v981 = vlog2.pop %v918
    %v982 = vmul.f32 %v981, 0.6931472
    %v983 = vlog2.pop %v920
    %v984 = vmul.f32 %v983, 0.6931472
    %v985 = vlog2.pop %v922
    %v986 = vmul.f32 %v985, 0.6931472
    %v987 = vlog2.pop %v924
    %v988 = vmul.f32 %v987, 0.6931472
    %v989 = vlog2.pop %v926
    %v990 = vmul.f32 %v989, 0.6931472
    %v991 = vlog2.pop %v928
    %v992 = vmul.f32 %v991, 0.6931472
    %v993 = vlog2.pop %v930
    %v994 = vmul.f32 %v993, 0.6931472
    %v995 = vsub.f32 %v771, %v932
    %v996 = vsub.f32 %v772, %v934
    %v997 = vsub.f32 %v773, %v936
    %v998 = vsub.f32 %v774, %v938
    %v999 = vsub.f32 %v775, %v940
    %v1000 = vsub.f32 %v776, %v942
    %v1001 = vsub.f32 %v777, %v944
    %v1002 = vsub.f32 %v778, %v946
    %v1003 = vsub.f32 %v779, %v948
    %v1004 = vsub.f32 %v780, %v950
    %v1005 = vsub.f32 %v781, %v952
    %v1006 = vsub.f32 %v782, %v954
    %v1007 = vsub.f32 %v783, %v956
    %v1008 = vsub.f32 %v784, %v958
    %v1009 = vsub.f32 %v785, %v960
    %v1010 = vsub.f32 %v786, %v962
    %v1011 = vsub.f32 %v787, %v964
    %v1012 = vsub.f32 %v788, %v966
    %v1013 = vsub.f32 %v789, %v968
    %v1014 = vsub.f32 %v790, %v970
    %v1015 = vsub.f32 %v791, %v972
    %v1016 = vsub.f32 %v792, %v974
    %v1017 = vsub.f32 %v793, %v976
    %v1018 = vsub.f32 %v794, %v978
    %v1019 = vsub.f32 %v795, %v980
    %v1020 = vsub.f32 %v796, %v982
    %v1021 = vsub.f32 %v797, %v984
    %v1022 = vsub.f32 %v798, %v986
    %v1023 = vsub.f32 %v799, %v988
    %v1024 = vsub.f32 %v800, %v990
    %v1025 = vsub.f32 %v801, %v992
    %v1026 = vsub.f32 %v802, %v994
    %1027 = vst [vmem:[%s3] sm:$0xff] %v995
    %1028 = vst [vmem:[%s3 + $0x8] sm:$0xff] %v996
    %1029 = vst [vmem:[%s3 + $0x10] sm:$0xff] %v997
    %1030 = vst [vmem:[%s3 + $0x18] sm:$0xff] %v998
    %1031 = vst [vmem:[%s3 + $0x20] sm:$0xff] %v999
    %1032 = vst [vmem:[%s3 + $0x28] sm:$0xff] %v1000
    %1033 = vst [vmem:[%s3 + $0x30] sm:$0xff] %v1001
    %1034 = vst [vmem:[%s3 + $0x38] sm:$0xff] %v1002
    %1035 = vst [vmem:[%s3 + $0x40] sm:$0xff] %v1003
    %1036 = vst [vmem:[%s3 + $0x48] sm:$0xff] %v1004
    %1037 = vst [vmem:[%s3 + $0x50] sm:$0xff] %v1005
    %1038 = vst [vmem:[%s3 + $0x58] sm:$0xff] %v1006
    %1039 = vst [vmem:[%s3 + $0x60] sm:$0xff] %v1007
    %1040 = vst [vmem:[%s3 + $0x68] sm:$0xff] %v1008
    %1041 = vst [vmem:[%s3 + $0x70] sm:$0xff] %v1009
    %1042 = vst [vmem:[%s3 + $0x78] sm:$0xff] %v1010
    %1043 = vst [vmem:[%s3 + $0x80] sm:$0xff] %v1011
    %1044 = vst [vmem:[%s3 + $0x88] sm:$0xff] %v1012
    %1045 = vst [vmem:[%s3 + $0x90] sm:$0xff] %v1013
    %1046 = vst [vmem:[%s3 + $0x98] sm:$0xff] %v1014
    %1047 = vst [vmem:[%s3 + $0xa0] sm:$0xff] %v1015
    %1048 = vst [vmem:[%s3 + $0xa8] sm:$0xff] %v1016
    %1049 = vst [vmem:[%s3 + $0xb0] sm:$0xff] %v1017
    %1050 = vst [vmem:[%s3 + $0xb8] sm:$0xff] %v1018
    %1051 = vst [vmem:[%s3 + $0xc0] sm:$0xff] %v1019
    %1052 = vst [vmem:[%s3 + $0xc8] sm:$0xff] %v1020
    %1053 = vst [vmem:[%s3 + $0xd0] sm:$0xff] %v1021
    %1054 = vst [vmem:[%s3 + $0xd8] sm:$0xff] %v1022
    %1055 = vst [vmem:[%s3 + $0xe0] sm:$0xff] %v1023
    %1056 = vst [vmem:[%s3 + $0xe8] sm:$0xff] %v1024
    %1057 = vst [vmem:[%s3 + $0xf0] sm:$0xff] %v1025
    %1058 = vst [vmem:[%s3 + $0xf8] sm:$0xff] %v1026
  $region21: #{gcn_forward.5} parent=0 // pred_fallthru
    _
  // Predicated region
  $region22: #{gcn_forward.5} parent=0 // pred_check
    _
  $region23: #{gcn_forward.5} parent=0 // pred_check_branch
    %1060 = sbr.rel (0) target = $region25
  $region24: #{gcn_forward.5} parent=0 // pred_region
    _
  $region25: #{gcn_forward.5} parent=0 // pred_fallthru
    _
  // Predicated region
  $region26: #{gcn_forward.5} parent=0 // pred_check
    _
  $region27: #{gcn_forward.5} parent=0 // pred_check_branch
    %1062 = sbr.rel (0) target = $region29
  $region28: #{gcn_forward.5} parent=0 // pred_region
    _
  $region29: #{gcn_forward.5} parent=0 // pred_fallthru
    _

// kernel: gcn_forward.4
$region0: #{gcn_forward.4}
  #allocation0 [shape = 'u32[]', space=smem, size = 0x4, offset = 0x4, fixed_abs, tag = 'smem constant byte address 0x4 - core index']
  #allocation1 [shape = 'u32[144,128]{1,0:T(1,128)}', space=vmem, size = 0x12000, scoped, tag = 'internal scratch']
  #allocation2 [shape = 'f32[256,128]{1,0:T(8,128)}', space=vmem, size = 0x20000, scoped, tag = 'scratch operand']
  %s0 = inlined_call_operand.vmem [shape: bf16[256,256], index: 0, kind: input, shape index: {}]
  %s1 = inlined_call_operand.vmem [shape: bf16[256,128], index: 1, kind: input, shape index: {}]
  %s2 = inlined_call_operand.vmem [shape: f32[1,128], index: 2, kind: input, shape index: {}]
  %s3 = inlined_call_operand.vmem [shape: bf16[128,128], index: 3, kind: input, shape index: {}]
  %s4 = inlined_call_operand.vmem [shape: bf16[256,128], index: 4, kind: output, shape index: {}]
  %s5 = sld [smem:[#allocation0]]
  $region34: #{gcn_forward.4} parent=0
    _
  %s7 = ssub.s32 1, %s5
  %s8 = scalar_select 0, %s7, %s5
  // Predicated region
  $region2: #{gcn_forward.4} parent=0 // pred_check
    _
  $region3: #{gcn_forward.4} parent=0 // pred_check_branch
    %10 = sbr.rel (0) target = $region5
  $region4: #{gcn_forward.4} parent=0 // pred_region
    _
  $region5: #{gcn_forward.4} parent=0 // pred_fallthru
    _
  // Predicated region
  $region6: #{gcn_forward.4} parent=0 // pred_check
    _
  $region7: #{gcn_forward.4} parent=0 // pred_check_branch
    %12 = sbr.rel (0) target = $region9
  $region8: #{gcn_forward.4} parent=0 // pred_region
    _
  $region9: #{gcn_forward.4} parent=0 // pred_fallthru
    _
  // Predicated region
  $region10: #{gcn_forward.4} parent=0 // pred_check
    _
  $region11: #{gcn_forward.4} parent=0 // pred_check_branch
    %14 = sbr.rel (0) target = $region13
  $region12: #{gcn_forward.4} parent=0 // pred_region
    _
  $region13: #{gcn_forward.4} parent=0 // pred_fallthru
    _
  // Predicated region
  $region14: #{gcn_forward.4} parent=0 // pred_check
    _
  $region15: #{gcn_forward.4} parent=0 // pred_check_branch
    %16 = sbr.rel (0) target = $region17
  $region16: #{gcn_forward.4} parent=0 // pred_region
    _
  $region17: #{gcn_forward.4} parent=0 // pred_fallthru
    _
  %p18 = scmp.eq.s32.totalorder 0, 0
  // Predicated region
  $region18: #{gcn_forward.4} parent=0 // pred_check
    %p19 = pneg %p18
  $region19: #{gcn_forward.4} parent=0 // pred_check_branch
    %21 = sbr.rel (%p19) target = $region21
  $region20: #{gcn_forward.4} parent=0 // pred_region
    %22 = vst [vmem:[#allocation2] sm:$0xff] 0.0
    %23 = vst [vmem:[#allocation2 + $0x8] sm:$0xff] 0.0
    %24 = vst [vmem:[#allocation2 + $0x10] sm:$0xff] 0.0
    %25 = vst [vmem:[#allocation2 + $0x18] sm:$0xff] 0.0
    %26 = vst [vmem:[#allocation2 + $0x20] sm:$0xff] 0.0
    %27 = vst [vmem:[#allocation2 + $0x28] sm:$0xff] 0.0
    %28 = vst [vmem:[#allocation2 + $0x30] sm:$0xff] 0.0
    %29 = vst [vmem:[#allocation2 + $0x38] sm:$0xff] 0.0
    %30 = vst [vmem:[#allocation2 + $0x40] sm:$0xff] 0.0
    %31 = vst [vmem:[#allocation2 + $0x48] sm:$0xff] 0.0
    %32 = vst [vmem:[#allocation2 + $0x50] sm:$0xff] 0.0
    %33 = vst [vmem:[#allocation2 + $0x58] sm:$0xff] 0.0
    %34 = vst [vmem:[#allocation2 + $0x60] sm:$0xff] 0.0
    %35 = vst [vmem:[#allocation2 + $0x68] sm:$0xff] 0.0
    %36 = vst [vmem:[#allocation2 + $0x70] sm:$0xff] 0.0
    %37 = vst [vmem:[#allocation2 + $0x78] sm:$0xff] 0.0
    %38 = vst [vmem:[#allocation2 + $0x80] sm:$0xff] 0.0
    %39 = vst [vmem:[#allocation2 + $0x88] sm:$0xff] 0.0
    %40 = vst [vmem:[#allocation2 + $0x90] sm:$0xff] 0.0
    %41 = vst [vmem:[#allocation2 + $0x98] sm:$0xff] 0.0
    %42 = vst [vmem:[#allocation2 + $0xa0] sm:$0xff] 0.0
    %43 = vst [vmem:[#allocation2 + $0xa8] sm:$0xff] 0.0
    %44 = vst [vmem:[#allocation2 + $0xb0] sm:$0xff] 0.0
    %45 = vst [vmem:[#allocation2 + $0xb8] sm:$0xff] 0.0
    %46 = vst [vmem:[#allocation2 + $0xc0] sm:$0xff] 0.0
    %47 = vst [vmem:[#allocation2 + $0xc8] sm:$0xff] 0.0
    %48 = vst [vmem:[#allocation2 + $0xd0] sm:$0xff] 0.0
    %49 = vst [vmem:[#allocation2 + $0xd8] sm:$0xff] 0.0
    %50 = vst [vmem:[#allocation2 + $0xe0] sm:$0xff] 0.0
    %51 = vst [vmem:[#allocation2 + $0xe8] sm:$0xff] 0.0
    %52 = vst [vmem:[#allocation2 + $0xf0] sm:$0xff] 0.0
    %53 = vst [vmem:[#allocation2 + $0xf8] sm:$0xff] 0.0
  $region21: #{gcn_forward.4} parent=0 // pred_fallthru
    _
  %s54 = smul.u32 0, 256
  %s55 = sshra.s32 %s54, 3
  %s56 = sand.u32 %s54, 7
  %s57 = smul.addr %s55, 4
  %s58 = scalar_lea.vmem %s1, %s57
  %v59 = vld [vmem:[%s58] sm:$0xf]
  %v60 = vld [vmem:[%s58 + $0x4] sm:$0xf]
  %v61 = vld [vmem:[%s58 + $0x8] sm:$0xf]
  %v62 = vld [vmem:[%s58 + $0xc] sm:$0xf]
  %v63 = vld [vmem:[%s58 + $0x10] sm:$0xf]
  %v64 = vld [vmem:[%s58 + $0x14] sm:$0xf]
  %v65 = vld [vmem:[%s58 + $0x18] sm:$0xf]
  %v66 = vld [vmem:[%s58 + $0x1c] sm:$0xf]
  %v67 = vld [vmem:[%s58 + $0x20] sm:$0xf]
  %v68 = vld [vmem:[%s58 + $0x24] sm:$0xf]
  %v69 = vld [vmem:[%s58 + $0x28] sm:$0xf]
  %v70 = vld [vmem:[%s58 + $0x2c] sm:$0xf]
  %v71 = vld [vmem:[%s58 + $0x30] sm:$0xf]
  %v72 = vld [vmem:[%s58 + $0x34] sm:$0xf]
  %v73 = vld [vmem:[%s58 + $0x38] sm:$0xf]
  %v74 = vld [vmem:[%s58 + $0x3c] sm:$0xf]
  %v75 = vld [vmem:[%s58 + $0x40] sm:$0xf]
  %v76 = vld [vmem:[%s58 + $0x44] sm:$0xf]
  %v77 = vld [vmem:[%s58 + $0x48] sm:$0xf]
  %v78 = vld [vmem:[%s58 + $0x4c] sm:$0xf]
  %v79 = vld [vmem:[%s58 + $0x50] sm:$0xf]
  %v80 = vld [vmem:[%s58 + $0x54] sm:$0xf]
  %v81 = vld [vmem:[%s58 + $0x58] sm:$0xf]
  %v82 = vld [vmem:[%s58 + $0x5c] sm:$0xf]
  %v83 = vld [vmem:[%s58 + $0x60] sm:$0xf]
  %v84 = vld [vmem:[%s58 + $0x64] sm:$0xf]
  %v85 = vld [vmem:[%s58 + $0x68] sm:$0xf]
  %v86 = vld [vmem:[%s58 + $0x6c] sm:$0xf]
  %v87 = vld [vmem:[%s58 + $0x70] sm:$0xf]
  %v88 = vld [vmem:[%s58 + $0x74] sm:$0xf]
  %v89 = vld [vmem:[%s58 + $0x78] sm:$0xf]
  %v90 = vld [vmem:[%s58 + $0x7c] sm:$0xf]
  %v91 = vld [vmem:[#allocation2] sm:$0xff]
  %v92 = vld [vmem:[#allocation2 + $0x8] sm:$0xff]
  %v93 = vld [vmem:[#allocation2 + $0x10] sm:$0xff]
  %v94 = vld [vmem:[#allocation2 + $0x18] sm:$0xff]
  %v95 = vld [vmem:[#allocation2 + $0x20] sm:$0xff]
  %v96 = vld [vmem:[#allocation2 + $0x28] sm:$0xff]
  %v97 = vld [vmem:[#allocation2 + $0x30] sm:$0xff]
  %v98 = vld [vmem:[#allocation2 + $0x38] sm:$0xff]
  %v99 = vld [vmem:[#allocation2 + $0x40] sm:$0xff]
  %v100 = vld [vmem:[#allocation2 + $0x48] sm:$0xff]
  %v101 = vld [vmem:[#allocation2 + $0x50] sm:$0xff]
  %v102 = vld [vmem:[#allocation2 + $0x58] sm:$0xff]
  %v103 = vld [vmem:[#allocation2 + $0x60] sm:$0xff]
  %v104 = vld [vmem:[#allocation2 + $0x68] sm:$0xff]
  %v105 = vld [vmem:[#allocation2 + $0x70] sm:$0xff]
  %v106 = vld [vmem:[#allocation2 + $0x78] sm:$0xff]
  %v107 = vld [vmem:[#allocation2 + $0x80] sm:$0xff]
  %v108 = vld [vmem:[#allocation2 + $0x88] sm:$0xff]
  %v109 = vld [vmem:[#allocation2 + $0x90] sm:$0xff]
  %v110 = vld [vmem:[#allocation2 + $0x98] sm:$0xff]
  %v111 = vld [vmem:[#allocation2 + $0xa0] sm:$0xff]
  %v112 = vld [vmem:[#allocation2 + $0xa8] sm:$0xff]
  %v113 = vld [vmem:[#allocation2 + $0xb0] sm:$0xff]
  %v114 = vld [vmem:[#allocation2 + $0xb8] sm:$0xff]
  %v115 = vld [vmem:[#allocation2 + $0xc0] sm:$0xff]
  %v116 = vld [vmem:[#allocation2 + $0xc8] sm:$0xff]
  %v117 = vld [vmem:[#allocation2 + $0xd0] sm:$0xff]
  %v118 = vld [vmem:[#allocation2 + $0xd8] sm:$0xff]
  %v119 = vld [vmem:[#allocation2 + $0xe0] sm:$0xff]
  %v120 = vld [vmem:[#allocation2 + $0xe8] sm:$0xff]
  %v121 = vld [vmem:[#allocation2 + $0xf0] sm:$0xff]
  %v122 = vld [vmem:[#allocation2 + $0xf8] sm:$0xff]
  %v123 = vld [vmem:[%s0] sm:$0xff]
  %v124 = vld [vmem:[%s0 + $0x8] sm:$0xff]
  %v125 = vld [vmem:[%s0 + $0x10] sm:$0xff]
  %v126 = vld [vmem:[%s0 + $0x18] sm:$0xff]
  %v127 = vld [vmem:[%s0 + $0x20] sm:$0xff]
  %v128 = vld [vmem:[%s0 + $0x28] sm:$0xff]
  %v129 = vld [vmem:[%s0 + $0x30] sm:$0xff]
  %v130 = vld [vmem:[%s0 + $0x38] sm:$0xff]
  %v131 = vld [vmem:[%s0 + $0x40] sm:$0xff]
  %v132 = vld [vmem:[%s0 + $0x48] sm:$0xff]
  %v133 = vld [vmem:[%s0 + $0x50] sm:$0xff]
  %v134 = vld [vmem:[%s0 + $0x58] sm:$0xff]
  %v135 = vld [vmem:[%s0 + $0x60] sm:$0xff]
  %v136 = vld [vmem:[%s0 + $0x68] sm:$0xff]
  %v137 = vld [vmem:[%s0 + $0x70] sm:$0xff]
  %v138 = vld [vmem:[%s0 + $0x78] sm:$0xff]
  %v139 = vld [vmem:[%s0 + $0x80] sm:$0xff]
  %v140 = vld [vmem:[%s0 + $0x88] sm:$0xff]
  %v141 = vld [vmem:[%s0 + $0x90] sm:$0xff]
  %v142 = vld [vmem:[%s0 + $0x98] sm:$0xff]
  %v143 = vld [vmem:[%s0 + $0xa0] sm:$0xff]
  %v144 = vld [vmem:[%s0 + $0xa8] sm:$0xff]
  %v145 = vld [vmem:[%s0 + $0xb0] sm:$0xff]
  %v146 = vld [vmem:[%s0 + $0xb8] sm:$0xff]
  %v147 = vld [vmem:[%s0 + $0xc0] sm:$0xff]
  %v148 = vld [vmem:[%s0 + $0xc8] sm:$0xff]
  %v149 = vld [vmem:[%s0 + $0xd0] sm:$0xff]
  %v150 = vld [vmem:[%s0 + $0xd8] sm:$0xff]
  %v151 = vld [vmem:[%s0 + $0xe0] sm:$0xff]
  %v152 = vld [vmem:[%s0 + $0xe8] sm:$0xff]
  %v153 = vld [vmem:[%s0 + $0xf0] sm:$0xff]
  %v154 = vld [vmem:[%s0 + $0xf8] sm:$0xff]
  %v187 = vunpack.c.l.b16 %v123
  %v188 = vunpack.c.h.b16 %v123
  %v189 = vunpack.c.l.b16 %v124
  %v190 = vunpack.c.h.b16 %v124
  %v191 = vunpack.c.l.b16 %v125
  %v192 = vunpack.c.h.b16 %v125
  %v193 = vunpack.c.l.b16 %v126
  %v194 = vunpack.c.h.b16 %v126
  %v195 = vunpack.c.l.b16 %v127
  %v196 = vunpack.c.h.b16 %v127
  %v197 = vunpack.c.l.b16 %v128
  %v198 = vunpack.c.h.b16 %v128
  %v199 = vunpack.c.l.b16 %v129
  %v200 = vunpack.c.h.b16 %v129
  %v201 = vunpack.c.l.b16 %v130
  %v202 = vunpack.c.h.b16 %v130
  %v203 = vunpack.c.l.b16 %v131
  %v204 = vunpack.c.h.b16 %v131
  %v205 = vunpack.c.l.b16 %v132
  %v206 = vunpack.c.h.b16 %v132
  %v207 = vunpack.c.l.b16 %v133
  %v208 = vunpack.c.h.b16 %v133
  %v209 = vunpack.c.l.b16 %v134
  %v210 = vunpack.c.h.b16 %v134
  %v211 = vunpack.c.l.b16 %v135
  %v212 = vunpack.c.h.b16 %v135
  %v213 = vunpack.c.l.b16 %v136
  %v214 = vunpack.c.h.b16 %v136
  %v215 = vunpack.c.l.b16 %v137
  %v216 = vunpack.c.h.b16 %v137
  %v217 = vunpack.c.l.b16 %v138
  %v218 = vunpack.c.h.b16 %v138
  %v219 = vunpack.c.l.b16 %v139
  %v220 = vunpack.c.h.b16 %v139
  %v221 = vunpack.c.l.b16 %v140
  %v222 = vunpack.c.h.b16 %v140
  %v223 = vunpack.c.l.b16 %v141
  %v224 = vunpack.c.h.b16 %v141
  %v225 = vunpack.c.l.b16 %v142
  %v226 = vunpack.c.h.b16 %v142
  %v227 = vunpack.c.l.b16 %v143
  %v228 = vunpack.c.h.b16 %v143
  %v229 = vunpack.c.l.b16 %v144
  %v230 = vunpack.c.h.b16 %v144
  %v231 = vunpack.c.l.b16 %v145
  %v232 = vunpack.c.h.b16 %v145
  %v233 = vunpack.c.l.b16 %v146
  %v234 = vunpack.c.h.b16 %v146
  %v235 = vunpack.c.l.b16 %v147
  %v236 = vunpack.c.h.b16 %v147
  %v237 = vunpack.c.l.b16 %v148
  %v238 = vunpack.c.h.b16 %v148
  %v239 = vunpack.c.l.b16 %v149
  %v240 = vunpack.c.h.b16 %v149
  %v241 = vunpack.c.l.b16 %v150
  %v242 = vunpack.c.h.b16 %v150
  %v243 = vunpack.c.l.b16 %v151
  %v244 = vunpack.c.h.b16 %v151
  %v245 = vunpack.c.l.b16 %v152
  %v246 = vunpack.c.h.b16 %v152
  %v247 = vunpack.c.l.b16 %v153
  %v248 = vunpack.c.h.b16 %v153
  %v249 = vunpack.c.l.b16 %v154
  %v250 = vunpack.c.h.b16 %v154
  %v251 = vpack.c.b16 %v189, %v187
  %v252 = vpack.c.b16 %v190, %v188
  %v253 = vpack.c.b16 %v193, %v191
  %v254 = vpack.c.b16 %v194, %v192
  %v255 = vpack.c.b16 %v197, %v195
  %v256 = vpack.c.b16 %v198, %v196
  %v257 = vpack.c.b16 %v201, %v199
  %v258 = vpack.c.b16 %v202, %v200
  %v259 = vpack.c.b16 %v205, %v203
  %v260 = vpack.c.b16 %v206, %v204
  %v261 = vpack.c.b16 %v209, %v207
  %v262 = vpack.c.b16 %v210, %v208
  %v263 = vpack.c.b16 %v213, %v211
  %v264 = vpack.c.b16 %v214, %v212
  %v265 = vpack.c.b16 %v217, %v215
  %v266 = vpack.c.b16 %v218, %v216
  %v267 = vpack.c.b16 %v221, %v219
  %v268 = vpack.c.b16 %v222, %v220
  %v269 = vpack.c.b16 %v225, %v223
  %v270 = vpack.c.b16 %v226, %v224
  %v271 = vpack.c.b16 %v229, %v227
  %v272 = vpack.c.b16 %v230, %v228
  %v273 = vpack.c.b16 %v233, %v231
  %v274 = vpack.c.b16 %v234, %v232
  %v275 = vpack.c.b16 %v237, %v235
  %v276 = vpack.c.b16 %v238, %v236
  %v277 = vpack.c.b16 %v241, %v239
  %v278 = vpack.c.b16 %v242, %v240
  %v279 = vpack.c.b16 %v245, %v243
  %v280 = vpack.c.b16 %v246, %v244
  %v281 = vpack.c.b16 %v249, %v247
  %v282 = vpack.c.b16 %v250, %v248
  %v347 = vunpack.c.l.b16 %v59
  %v348 = vunpack.c.l.b16 %v60
  %v349 = vunpack.c.l.b16 %v61
  %v350 = vunpack.c.l.b16 %v62
  %v351 = vunpack.c.l.b16 %v63
  %v352 = vunpack.c.l.b16 %v64
  %v353 = vunpack.c.l.b16 %v65
  %v354 = vunpack.c.l.b16 %v66
  %v355 = vunpack.c.l.b16 %v67
  %v356 = vunpack.c.l.b16 %v68
  %v357 = vunpack.c.l.b16 %v69
  %v358 = vunpack.c.l.b16 %v70
  %v359 = vunpack.c.l.b16 %v71
  %v360 = vunpack.c.l.b16 %v72
  %v361 = vunpack.c.l.b16 %v73
  %v362 = vunpack.c.l.b16 %v74
  %v363 = vunpack.c.l.b16 %v75
  %v364 = vunpack.c.l.b16 %v76
  %v365 = vunpack.c.l.b16 %v77
  %v366 = vunpack.c.l.b16 %v78
  %v367 = vunpack.c.l.b16 %v79
  %v368 = vunpack.c.l.b16 %v80
  %v369 = vunpack.c.l.b16 %v81
  %v370 = vunpack.c.l.b16 %v82
  %v371 = vunpack.c.l.b16 %v83
  %v372 = vunpack.c.l.b16 %v84
  %v373 = vunpack.c.l.b16 %v85
  %v374 = vunpack.c.l.b16 %v86
  %v375 = vunpack.c.l.b16 %v87
  %v376 = vunpack.c.l.b16 %v88
  %v377 = vunpack.c.l.b16 %v89
  %v378 = vunpack.c.l.b16 %v90
  %v379 = vpack.c.b16 %v348, %v347
  %v380 = vpack.c.b16 %v350, %v349
  %v381 = vpack.c.b16 %v352, %v351
  %v382 = vpack.c.b16 %v354, %v353
  %v383 = vpack.c.b16 %v356, %v355
  %v384 = vpack.c.b16 %v358, %v357
  %v385 = vpack.c.b16 %v360, %v359
  %v386 = vpack.c.b16 %v362, %v361
  %v387 = vpack.c.b16 %v364, %v363
  %v388 = vpack.c.b16 %v366, %v365
  %v389 = vpack.c.b16 %v368, %v367
  %v390 = vpack.c.b16 %v370, %v369
  %v391 = vpack.c.b16 %v372, %v371
  %v392 = vpack.c.b16 %v374, %v373
  %v393 = vpack.c.b16 %v376, %v375
  %v394 = vpack.c.b16 %v378, %v377
  %411 = vmatprep.subr.bf16.mxu0 0
  %412 = vmatpush1.bf16.msra.mxu0 %v379
  %413 = vmatprep.subr.bf16.mxu0 0
  %414 = vmatpush1.bf16.msra.mxu0 %v380
  %415 = vmatprep.subr.bf16.mxu0 0
  %416 = vmatpush1.bf16.msra.mxu0 %v381
  %417 = vmatprep.subr.bf16.mxu0 0
  %418 = vmatpush1.bf16.msra.mxu0 %v382
  %419 = vmatprep.subr.bf16.mxu0 0
  %420 = vmatpush1.bf16.msra.mxu0 %v383
  %421 = vmatprep.subr.bf16.mxu0 0
  %422 = vmatpush1.bf16.msra.mxu0 %v384
  %423 = vmatprep.subr.bf16.mxu0 0
  %424 = vmatpush1.bf16.msra.mxu0 %v385
  %425 = vmatprep.subr.bf16.mxu0 0
  %426 = vmatpush1.bf16.msra.mxu0 %v386
  %427 = vmatprep.subr.bf16.mxu0 0
  %428 = vmatpush1.bf16.msra.mxu0 %v387
  %429 = vmatprep.subr.bf16.mxu0 0
  %430 = vmatpush1.bf16.msra.mxu0 %v388
  %431 = vmatprep.subr.bf16.mxu0 0
  %432 = vmatpush1.bf16.msra.mxu0 %v389
  %433 = vmatprep.subr.bf16.mxu0 0
  %434 = vmatpush1.bf16.msra.mxu0 %v390
  %435 = vmatprep.subr.bf16.mxu0 0
  %436 = vmatpush1.bf16.msra.mxu0 %v391
  %437 = vmatprep.subr.bf16.mxu0 0
  %438 = vmatpush1.bf16.msra.mxu0 %v392
  %439 = vmatprep.subr.bf16.mxu0 0
  %440 = vmatpush1.bf16.msra.mxu0 %v393
  %441 = vmatprep.subr.bf16.mxu0 0
  %442 = vmatpush1.bf16.msra.mxu0 %v394
  %443 = vmatprep.mubr.bf16.mxu0 %v252
  %444 = vmatmul.mubr.bf16.gmra.mrb[0].mxu0 %v251
  %v445 = vpop.f32.mrb[0].mxu0
  %v446 = vadd.f32 0.0, %v445
  %v447 = vpop.f32.mrb[0].mxu0
  %v448 = vpop.f32.mrb[0].mxu0
  %v449 = vadd.f32 0.0, %v448
  %v450 = vpop.f32.mrb[0].mxu0
  %451 = vmatprep.mubr.bf16.mxu0 %v254
  %452 = vmatmul.mubr.bf16.gmra.mrb[0].mxu0 %v253
  %v453 = vpop.f32.mrb[0].mxu0
  %v454 = vadd.f32 0.0, %v453
  %v455 = vpop.f32.mrb[0].mxu0
  %v456 = vpop.f32.mrb[0].mxu0
  %v457 = vadd.f32 0.0, %v456
  %v458 = vpop.f32.mrb[0].mxu0
  %459 = vmatprep.mubr.bf16.mxu0 %v256
  %460 = vmatmul.mubr.bf16.gmra.mrb[0].mxu0 %v255
  %v461 = vpop.f32.mrb[0].mxu0
  %v462 = vadd.f32 0.0, %v461
  %v463 = vpop.f32.mrb[0].mxu0
  %v464 = vpop.f32.mrb[0].mxu0
  %v465 = vadd.f32 0.0, %v464
  %v466 = vpop.f32.mrb[0].mxu0
  %467 = vmatprep.mubr.bf16.mxu0 %v258
  %468 = vmatmul.mubr.bf16.gmra.mrb[0].mxu0 %v257
  %v469 = vpop.f32.mrb[0].mxu0
  %v470 = vadd.f32 0.0, %v469
  %v471 = vpop.f32.mrb[0].mxu0
  %v472 = vpop.f32.mrb[0].mxu0
  %v473 = vadd.f32 0.0, %v472
  %v474 = vpop.f32.mrb[0].mxu0
  %475 = vmatprep.mubr.bf16.mxu0 %v260
  %476 = vmatmul.mubr.bf16.gmra.mrb[0].mxu0 %v259
  %v477 = vpop.f32.mrb[0].mxu0
  %v478 = vadd.f32 0.0, %v477
  %v479 = vpop.f32.mrb[0].mxu0
  %v480 = vpop.f32.mrb[0].mxu0
  %v481 = vadd.f32 0.0, %v480
  %v482 = vpop.f32.mrb[0].mxu0
  %483 = vmatprep.mubr.bf16.mxu0 %v262
  %484 = vmatmul.mubr.bf16.gmra.mrb[0].mxu0 %v261
  %v485 = vpop.f32.mrb[0].mxu0
  %v486 = vadd.f32 0.0, %v485
  %v487 = vpop.f32.mrb[0].mxu0
  %v488 = vpop.f32.mrb[0].mxu0
  %v489 = vadd.f32 0.0, %v488
  %v490 = vpop.f32.mrb[0].mxu0
  %491 = vmatprep.mubr.bf16.mxu0 %v264
  %492 = vmatmul.mubr.bf16.gmra.mrb[0].mxu0 %v263
  %v493 = vpop.f32.mrb[0].mxu0
  %v494 = vadd.f32 0.0, %v493
  %v495 = vpop.f32.mrb[0].mxu0
  %v496 = vpop.f32.mrb[0].mxu0
  %v497 = vadd.f32 0.0, %v496
  %v498 = vpop.f32.mrb[0].mxu0
  %499 = vmatprep.mubr.bf16.mxu0 %v266
  %500 = vmatmul.mubr.bf16.gmra.mrb[0].mxu0 %v265
  %v501 = vpop.f32.mrb[0].mxu0
  %v502 = vadd.f32 0.0, %v501
  %v503 = vpop.f32.mrb[0].mxu0
  %v504 = vpop.f32.mrb[0].mxu0
  %v505 = vadd.f32 0.0, %v504
  %v506 = vpop.f32.mrb[0].mxu0
  %507 = vmatprep.mubr.bf16.mxu0 %v268
  %508 = vmatmul.mubr.bf16.gmra.mrb[0].mxu0 %v267
  %v509 = vpop.f32.mrb[0].mxu0
  %v510 = vadd.f32 0.0, %v509
  %v511 = vpop.f32.mrb[0].mxu0
  %v512 = vpop.f32.mrb[0].mxu0
  %v513 = vadd.f32 0.0, %v512
  %v514 = vpop.f32.mrb[0].mxu0
  %515 = vmatprep.mubr.bf16.mxu0 %v270
  %516 = vmatmul.mubr.bf16.gmra.mrb[0].mxu0 %v269
  %v517 = vpop.f32.mrb[0].mxu0
  %v518 = vadd.f32 0.0, %v517
  %v519 = vpop.f32.mrb[0].mxu0
  %v520 = vpop.f32.mrb[0].mxu0
  %v521 = vadd.f32 0.0, %v520
  %v522 = vpop.f32.mrb[0].mxu0
  %523 = vmatprep.mubr.bf16.mxu0 %v272
  %524 = vmatmul.mubr.bf16.gmra.mrb[0].mxu0 %v271
  %v525 = vpop.f32.mrb[0].mxu0
  %v526 = vadd.f32 0.0, %v525
  %v527 = vpop.f32.mrb[0].mxu0
  %v528 = vpop.f32.mrb[0].mxu0
  %v529 = vadd.f32 0.0, %v528
  %v530 = vpop.f32.mrb[0].mxu0
  %531 = vmatprep.mubr.bf16.mxu0 %v274
  %532 = vmatmul.mubr.bf16.gmra.mrb[0].mxu0 %v273
  %v533 = vpop.f32.mrb[0].mxu0
  %v534 = vadd.f32 0.0, %v533
  %v535 = vpop.f32.mrb[0].mxu0
  %v536 = vpop.f32.mrb[0].mxu0
  %v537 = vadd.f32 0.0, %v536
  %v538 = vpop.f32.mrb[0].mxu0
  %539 = vmatprep.mubr.bf16.mxu0 %v276
  %540 = vmatmul.mubr.bf16.gmra.mrb[0].mxu0 %v275
  %v541 = vpop.f32.mrb[0].mxu0
  %v542 = vadd.f32 0.0, %v541
  %v543 = vpop.f32.mrb[0].mxu0
  %v544 = vpop.f32.mrb[0].mxu0
  %v545 = vadd.f32 0.0, %v544
  %v546 = vpop.f32.mrb[0].mxu0
  %547 = vmatprep.mubr.bf16.mxu0 %v278
  %548 = vmatmul.mubr.bf16.gmra.mrb[0].mxu0 %v277
  %v549 = vpop.f32.mrb[0].mxu0
  %v550 = vadd.f32 0.0, %v549
  %v551 = vpop.f32.mrb[0].mxu0
  %v552 = vpop.f32.mrb[0].mxu0
  %v553 = vadd.f32 0.0, %v552
  %v554 = vpop.f32.mrb[0].mxu0
  %555 = vmatprep.mubr.bf16.mxu0 %v280
  %556 = vmatmul.mubr.bf16.gmra.mrb[0].mxu0 %v279
  %v557 = vpop.f32.mrb[0].mxu0
  %v558 = vadd.f32 0.0, %v557
  %v559 = vpop.f32.mrb[0].mxu0
  %v560 = vpop.f32.mrb[0].mxu0
  %v561 = vadd.f32 0.0, %v560
  %v562 = vpop.f32.mrb[0].mxu0
  %563 = vmatprep.mubr.bf16.mxu0 %v282
  %564 = vmatmul.mubr.bf16.gmra.mrb[0].mxu0 %v281
  %v565 = vpop.f32.mrb[0].mxu0
  %v566 = vadd.f32 0.0, %v565
  %v567 = vpop.f32.mrb[0].mxu0
  %v568 = vpop.f32.mrb[0].mxu0
  %v569 = vadd.f32 0.0, %v568
  %v570 = vpop.f32.mrb[0].mxu0
  %571 = vdwg.mxu0
  %v572 = vadd.f32 %v91, %v446
  %v573 = vadd.f32 %v92, %v449
  %v574 = vadd.f32 %v93, %v454
  %v575 = vadd.f32 %v94, %v457
  %v576 = vadd.f32 %v95, %v462
  %v577 = vadd.f32 %v96, %v465
  %v578 = vadd.f32 %v97, %v470
  %v579 = vadd.f32 %v98, %v473
  %v580 = vadd.f32 %v99, %v478
  %v581 = vadd.f32 %v100, %v481
  %v582 = vadd.f32 %v101, %v486
  %v583 = vadd.f32 %v102, %v489
  %v584 = vadd.f32 %v103, %v494
  %v585 = vadd.f32 %v104, %v497
  %v586 = vadd.f32 %v105, %v502
  %v587 = vadd.f32 %v106, %v505
  %v588 = vadd.f32 %v107, %v510
  %v589 = vadd.f32 %v108, %v513
  %v590 = vadd.f32 %v109, %v518
  %v591 = vadd.f32 %v110, %v521
  %v592 = vadd.f32 %v111, %v526
  %v593 = vadd.f32 %v112, %v529
  %v594 = vadd.f32 %v113, %v534
  %v595 = vadd.f32 %v114, %v537
  %v596 = vadd.f32 %v115, %v542
  %v597 = vadd.f32 %v116, %v545
  %v598 = vadd.f32 %v117, %v550
  %v599 = vadd.f32 %v118, %v553
  %v600 = vadd.f32 %v119, %v558
  %v601 = vadd.f32 %v120, %v561
  %v602 = vadd.f32 %v121, %v566
  %v603 = vadd.f32 %v122, %v569
  %604 = vst [vmem:[#allocation2] sm:$0xff] %v572
  %605 = vst [vmem:[#allocation2 + $0x8] sm:$0xff] %v573
  %606 = vst [vmem:[#allocation2 + $0x10] sm:$0xff] %v574
  %607 = vst [vmem:[#allocation2 + $0x18] sm:$0xff] %v575
  %608 = vst [vmem:[#allocation2 + $0x20] sm:$0xff] %v576
  %609 = vst [vmem:[#allocation2 + $0x28] sm:$0xff] %v577
  %610 = vst [vmem:[#allocation2 + $0x30] sm:$0xff] %v578
  %611 = vst [vmem:[#allocation2 + $0x38] sm:$0xff] %v579
  %612 = vst [vmem:[#allocation2 + $0x40] sm:$0xff] %v580
  %613 = vst [vmem:[#allocation2 + $0x48] sm:$0xff] %v581
  %614 = vst [vmem:[#allocation2 + $0x50] sm:$0xff] %v582
  %615 = vst [vmem:[#allocation2 + $0x58] sm:$0xff] %v583
  %616 = vst [vmem:[#allocation2 + $0x60] sm:$0xff] %v584
  %617 = vst [vmem:[#allocation2 + $0x68] sm:$0xff] %v585
  %618 = vst [vmem:[#allocation2 + $0x70] sm:$0xff] %v586
  %619 = vst [vmem:[#allocation2 + $0x78] sm:$0xff] %v587
  %620 = vst [vmem:[#allocation2 + $0x80] sm:$0xff] %v588
  %621 = vst [vmem:[#allocation2 + $0x88] sm:$0xff] %v589
  %622 = vst [vmem:[#allocation2 + $0x90] sm:$0xff] %v590
  %623 = vst [vmem:[#allocation2 + $0x98] sm:$0xff] %v591
  %624 = vst [vmem:[#allocation2 + $0xa0] sm:$0xff] %v592
  %625 = vst [vmem:[#allocation2 + $0xa8] sm:$0xff] %v593
  %626 = vst [vmem:[#allocation2 + $0xb0] sm:$0xff] %v594
  %627 = vst [vmem:[#allocation2 + $0xb8] sm:$0xff] %v595
  %628 = vst [vmem:[#allocation2 + $0xc0] sm:$0xff] %v596
  %629 = vst [vmem:[#allocation2 + $0xc8] sm:$0xff] %v597
  %630 = vst [vmem:[#allocation2 + $0xd0] sm:$0xff] %v598
  %631 = vst [vmem:[#allocation2 + $0xd8] sm:$0xff] %v599
  %632 = vst [vmem:[#allocation2 + $0xe0] sm:$0xff] %v600
  %633 = vst [vmem:[#allocation2 + $0xe8] sm:$0xff] %v601
  %634 = vst [vmem:[#allocation2 + $0xf0] sm:$0xff] %v602
  %635 = vst [vmem:[#allocation2 + $0xf8] sm:$0xff] %v603
  // Predicated region
  $region22: #{gcn_forward.4} parent=0 // pred_check
    %p636 = pneg %p18
  $region23: #{gcn_forward.4} parent=0 // pred_check_branch
    %638 = sbr.rel (%p636) target = $region25
  $region24: #{gcn_forward.4} parent=0 // pred_region
    %v639 = vld [vmem:[#allocation2] sm:$0xff]
    %v640 = vld [vmem:[#allocation2 + $0x8] sm:$0xff]
    %v641 = vld [vmem:[#allocation2 + $0x10] sm:$0xff]
    %v642 = vld [vmem:[#allocation2 + $0x18] sm:$0xff]
    %v643 = vld [vmem:[#allocation2 + $0x20] sm:$0xff]
    %v644 = vld [vmem:[#allocation2 + $0x28] sm:$0xff]
    %v645 = vld [vmem:[#allocation2 + $0x30] sm:$0xff]
    %v646 = vld [vmem:[#allocation2 + $0x38] sm:$0xff]
    %v647 = vld [vmem:[#allocation2 + $0x40] sm:$0xff]
    %v648 = vld [vmem:[#allocation2 + $0x48] sm:$0xff]
    %v649 = vld [vmem:[#allocation2 + $0x50] sm:$0xff]
    %v650 = vld [vmem:[#allocation2 + $0x58] sm:$0xff]
    %v651 = vld [vmem:[#allocation2 + $0x60] sm:$0xff]
    %v652 = vld [vmem:[#allocation2 + $0x68] sm:$0xff]
    %v653 = vld [vmem:[#allocation2 + $0x70] sm:$0xff]
    %v654 = vld [vmem:[#allocation2 + $0x78] sm:$0xff]
    %v655 = vld [vmem:[#allocation2 + $0x80] sm:$0xff]
    %v656 = vld [vmem:[#allocation2 + $0x88] sm:$0xff]
    %v657 = vld [vmem:[#allocation2 + $0x90] sm:$0xff]
    %v658 = vld [vmem:[#allocation2 + $0x98] sm:$0xff]
    %v659 = vld [vmem:[#allocation2 + $0xa0] sm:$0xff]
    %v660 = vld [vmem:[#allocation2 + $0xa8] sm:$0xff]
    %v661 = vld [vmem:[#allocation2 + $0xb0] sm:$0xff]
    %v662 = vld [vmem:[#allocation2 + $0xb8] sm:$0xff]
    %v663 = vld [vmem:[#allocation2 + $0xc0] sm:$0xff]
    %v664 = vld [vmem:[#allocation2 + $0xc8] sm:$0xff]
    %v665 = vld [vmem:[#allocation2 + $0xd0] sm:$0xff]
    %v666 = vld [vmem:[#allocation2 + $0xd8] sm:$0xff]
    %v667 = vld [vmem:[#allocation2 + $0xe0] sm:$0xff]
    %v668 = vld [vmem:[#allocation2 + $0xe8] sm:$0xff]
    %v669 = vld [vmem:[#allocation2 + $0xf0] sm:$0xff]
    %v670 = vld [vmem:[#allocation2 + $0xf8] sm:$0xff]
    %v671 = vld [vmem:[%s2] sm:$0x1]
    %v673 = vlaneseq
    %v674 = vshrl.u32 %v673, 7
    %v675 = vsub.s32 0, %v674
    %v676 = vrot.slane %v671, %v675
    %v678 = vadd.f32 %v639, %v676
    %v679 = vadd.f32 %v640, %v676
    %v680 = vadd.f32 %v641, %v676
    %v681 = vadd.f32 %v642, %v676
    %v682 = vadd.f32 %v643, %v676
    %v683 = vadd.f32 %v644, %v676
    %v684 = vadd.f32 %v645, %v676
    %v685 = vadd.f32 %v646, %v676
    %v686 = vadd.f32 %v647, %v676
    %v687 = vadd.f32 %v648, %v676
    %v688 = vadd.f32 %v649, %v676
    %v689 = vadd.f32 %v650, %v676
    %v690 = vadd.f32 %v651, %v676
    %v691 = vadd.f32 %v652, %v676
    %v692 = vadd.f32 %v653, %v676
    %v693 = vadd.f32 %v654, %v676
    %v694 = vadd.f32 %v655, %v676
    %v695 = vadd.f32 %v656, %v676
    %v696 = vadd.f32 %v657, %v676
    %v697 = vadd.f32 %v658, %v676
    %v698 = vadd.f32 %v659, %v676
    %v699 = vadd.f32 %v660, %v676
    %v700 = vadd.f32 %v661, %v676
    %v701 = vadd.f32 %v662, %v676
    %v702 = vadd.f32 %v663, %v676
    %v703 = vadd.f32 %v664, %v676
    %v704 = vadd.f32 %v665, %v676
    %v705 = vadd.f32 %v666, %v676
    %v706 = vadd.f32 %v667, %v676
    %v707 = vadd.f32 %v668, %v676
    %v708 = vadd.f32 %v669, %v676
    %v709 = vadd.f32 %v670, %v676
    %v710 = vmax.f32 %v678, 0.0
    %v711 = vmax.f32 %v679, 0.0
    %v712 = vmax.f32 %v680, 0.0
    %v713 = vmax.f32 %v681, 0.0
    %v714 = vmax.f32 %v682, 0.0
    %v715 = vmax.f32 %v683, 0.0
    %v716 = vmax.f32 %v684, 0.0
    %v717 = vmax.f32 %v685, 0.0
    %v718 = vmax.f32 %v686, 0.0
    %v719 = vmax.f32 %v687, 0.0
    %v720 = vmax.f32 %v688, 0.0
    %v721 = vmax.f32 %v689, 0.0
    %v722 = vmax.f32 %v690, 0.0
    %v723 = vmax.f32 %v691, 0.0
    %v724 = vmax.f32 %v692, 0.0
    %v725 = vmax.f32 %v693, 0.0
    %v726 = vmax.f32 %v694, 0.0
    %v727 = vmax.f32 %v695, 0.0
    %v728 = vmax.f32 %v696, 0.0
    %v729 = vmax.f32 %v697, 0.0
    %v730 = vmax.f32 %v698, 0.0
    %v731 = vmax.f32 %v699, 0.0
    %v732 = vmax.f32 %v700, 0.0
    %v733 = vmax.f32 %v701, 0.0
    %v734 = vmax.f32 %v702, 0.0
    %v735 = vmax.f32 %v703, 0.0
    %v736 = vmax.f32 %v704, 0.0
    %v737 = vmax.f32 %v705, 0.0
    %v738 = vmax.f32 %v706, 0.0
    %v739 = vmax.f32 %v707, 0.0
    %v740 = vmax.f32 %v708, 0.0
    %v741 = vmax.f32 %v709, 0.0
    %v742 = vpack.c.bf16 %v711, %v710
    %v743 = vpack.c.bf16 %v713, %v712
    %v744 = vpack.c.bf16 %v715, %v714
    %v745 = vpack.c.bf16 %v717, %v716
    %v746 = vpack.c.bf16 %v719, %v718
    %v747 = vpack.c.bf16 %v721, %v720
    %v748 = vpack.c.bf16 %v723, %v722
    %v749 = vpack.c.bf16 %v725, %v724
    %v750 = vpack.c.bf16 %v727, %v726
    %v751 = vpack.c.bf16 %v729, %v728
    %v752 = vpack.c.bf16 %v731, %v730
    %v753 = vpack.c.bf16 %v733, %v732
    %v754 = vpack.c.bf16 %v735, %v734
    %v755 = vpack.c.bf16 %v737, %v736
    %v756 = vpack.c.bf16 %v739, %v738
    %v757 = vpack.c.bf16 %v741, %v740
    %v758 = vld [vmem:[%s3] sm:$0xf]
    %v759 = vld [vmem:[%s3 + $0x4] sm:$0xf]
    %v760 = vld [vmem:[%s3 + $0x8] sm:$0xf]
    %v761 = vld [vmem:[%s3 + $0xc] sm:$0xf]
    %v762 = vld [vmem:[%s3 + $0x10] sm:$0xf]
    %v763 = vld [vmem:[%s3 + $0x14] sm:$0xf]
    %v764 = vld [vmem:[%s3 + $0x18] sm:$0xf]
    %v765 = vld [vmem:[%s3 + $0x1c] sm:$0xf]
    %v766 = vld [vmem:[%s3 + $0x20] sm:$0xf]
    %v767 = vld [vmem:[%s3 + $0x24] sm:$0xf]
    %v768 = vld [vmem:[%s3 + $0x28] sm:$0xf]
    %v769 = vld [vmem:[%s3 + $0x2c] sm:$0xf]
    %v770 = vld [vmem:[%s3 + $0x30] sm:$0xf]
    %v771 = vld [vmem:[%s3 + $0x34] sm:$0xf]
    %v772 = vld [vmem:[%s3 + $0x38] sm:$0xf]
    %v773 = vld [vmem:[%s3 + $0x3c] sm:$0xf]
    %v790 = vunpack.c.l.b16 %v758
    %v791 = vunpack.c.l.b16 %v759
    %v792 = vunpack.c.l.b16 %v760
    %v793 = vunpack.c.l.b16 %v761
    %v794 = vunpack.c.l.b16 %v762
    %v795 = vunpack.c.l.b16 %v763
    %v796 = vunpack.c.l.b16 %v764
    %v797 = vunpack.c.l.b16 %v765
    %v798 = vunpack.c.l.b16 %v766
    %v799 = vunpack.c.l.b16 %v767
    %v800 = vunpack.c.l.b16 %v768
    %v801 = vunpack.c.l.b16 %v769
    %v802 = vunpack.c.l.b16 %v770
    %v803 = vunpack.c.l.b16 %v771
    %v804 = vunpack.c.l.b16 %v772
    %v805 = vunpack.c.l.b16 %v773
    %v806 = vpack.c.b16 %v791, %v790
    %v807 = vpack.c.b16 %v793, %v792
    %v808 = vpack.c.b16 %v795, %v794
    %v809 = vpack.c.b16 %v797, %v796
    %v810 = vpack.c.b16 %v799, %v798
    %v811 = vpack.c.b16 %v801, %v800
    %v812 = vpack.c.b16 %v803, %v802
    %v813 = vpack.c.b16 %v805, %v804
    %822 = vmatprep.subr.bf16.mxu0 0
    %823 = vmatpush1.bf16.msra.mxu0 %v806
    %824 = vmatprep.subr.bf16.mxu0 0
    %825 = vmatpush1.bf16.msra.mxu0 %v807
    %826 = vmatprep.subr.bf16.mxu0 0
    %827 = vmatpush1.bf16.msra.mxu0 %v808
    %828 = vmatprep.subr.bf16.mxu0 0
    %829 = vmatpush1.bf16.msra.mxu0 %v809
    %830 = vmatprep.subr.bf16.mxu0 0
    %831 = vmatpush1.bf16.msra.mxu0 %v810
    %832 = vmatprep.subr.bf16.mxu0 0
    %833 = vmatpush1.bf16.msra.mxu0 %v811
    %834 = vmatprep.subr.bf16.mxu0 0
    %835 = vmatpush1.bf16.msra.mxu0 %v812
    %836 = vmatprep.subr.bf16.mxu0 0
    %837 = vmatpush1.bf16.msra.mxu0 %v813
    %838 = vmatprep.subr.bf16.mxu0 0
    %839 = vmatpush1.bf16.msra.mxu0 0
    %840 = vmatprep.subr.bf16.mxu0 0
    %841 = vmatpush1.bf16.msra.mxu0 0
    %842 = vmatprep.subr.bf16.mxu0 0
    %843 = vmatpush1.bf16.msra.mxu0 0
    %844 = vmatprep.subr.bf16.mxu0 0
    %845 = vmatpush1.bf16.msra.mxu0 0
    %846 = vmatprep.subr.bf16.mxu0 0
    %847 = vmatpush1.bf16.msra.mxu0 0
    %848 = vmatprep.subr.bf16.mxu0 0
    %849 = vmatpush1.bf16.msra.mxu0 0
    %850 = vmatprep.subr.bf16.mxu0 0
    %851 = vmatpush1.bf16.msra.mxu0 0
    %852 = vmatprep.subr.bf16.mxu0 0
    %853 = vmatpush1.bf16.msra.mxu0 0
    %854 = vmatprep.mubr.bf16.mxu0 0
    %855 = vmatmul.mubr.bf16.gmra.mrb[0].mxu0 %v742
    %v856 = vpop.f32.mrb[0].mxu0
    %v857 = vadd.f32 0.0, %v856
    %v858 = vpop.f32.mrb[0].mxu0
    %v859 = vpop.f32.mrb[0].mxu0
    %v860 = vadd.f32 0.0, %v859
    %v861 = vpop.f32.mrb[0].mxu0
    %862 = vmatprep.mubr.bf16.mxu0 0
    %863 = vmatmul.mubr.bf16.gmra.mrb[0].mxu0 %v743
    %v864 = vpop.f32.mrb[0].mxu0
    %v865 = vadd.f32 0.0, %v864
    %v866 = vpop.f32.mrb[0].mxu0
    %v867 = vpop.f32.mrb[0].mxu0
    %v868 = vadd.f32 0.0, %v867
    %v869 = vpop.f32.mrb[0].mxu0
    %870 = vmatprep.mubr.bf16.mxu0 0
    %871 = vmatmul.mubr.bf16.gmra.mrb[0].mxu0 %v744
    %v872 = vpop.f32.mrb[0].mxu0
    %v873 = vadd.f32 0.0, %v872
    %v874 = vpop.f32.mrb[0].mxu0
    %v875 = vpop.f32.mrb[0].mxu0
    %v876 = vadd.f32 0.0, %v875
    %v877 = vpop.f32.mrb[0].mxu0
    %878 = vmatprep.mubr.bf16.mxu0 0
    %879 = vmatmul.mubr.bf16.gmra.mrb[0].mxu0 %v745
    %v880 = vpop.f32.mrb[0].mxu0
    %v881 = vadd.f32 0.0, %v880
    %v882 = vpop.f32.mrb[0].mxu0
    %v883 = vpop.f32.mrb[0].mxu0
    %v884 = vadd.f32 0.0, %v883
    %v885 = vpop.f32.mrb[0].mxu0
    %886 = vmatprep.mubr.bf16.mxu0 0
    %887 = vmatmul.mubr.bf16.gmra.mrb[0].mxu0 %v746
    %v888 = vpop.f32.mrb[0].mxu0
    %v889 = vadd.f32 0.0, %v888
    %v890 = vpop.f32.mrb[0].mxu0
    %v891 = vpop.f32.mrb[0].mxu0
    %v892 = vadd.f32 0.0, %v891
    %v893 = vpop.f32.mrb[0].mxu0
    %894 = vmatprep.mubr.bf16.mxu0 0
    %895 = vmatmul.mubr.bf16.gmra.mrb[0].mxu0 %v747
    %v896 = vpop.f32.mrb[0].mxu0
    %v897 = vadd.f32 0.0, %v896
    %v898 = vpop.f32.mrb[0].mxu0
    %v899 = vpop.f32.mrb[0].mxu0
    %v900 = vadd.f32 0.0, %v899
    %v901 = vpop.f32.mrb[0].mxu0
    %902 = vmatprep.mubr.bf16.mxu0 0
    %903 = vmatmul.mubr.bf16.gmra.mrb[0].mxu0 %v748
    %v904 = vpop.f32.mrb[0].mxu0
    %v905 = vadd.f32 0.0, %v904
    %v906 = vpop.f32.mrb[0].mxu0
    %v907 = vpop.f32.mrb[0].mxu0
    %v908 = vadd.f32 0.0, %v907
    %v909 = vpop.f32.mrb[0].mxu0
    %910 = vmatprep.mubr.bf16.mxu0 0
    %911 = vmatmul.mubr.bf16.gmra.mrb[0].mxu0 %v749
    %v912 = vpop.f32.mrb[0].mxu0
    %v913 = vadd.f32 0.0, %v912
    %v914 = vpop.f32.mrb[0].mxu0
    %v915 = vpop.f32.mrb[0].mxu0
    %v916 = vadd.f32 0.0, %v915
    %v917 = vpop.f32.mrb[0].mxu0
    %918 = vmatprep.mubr.bf16.mxu0 0
    %919 = vmatmul.mubr.bf16.gmra.mrb[0].mxu0 %v750
    %v920 = vpop.f32.mrb[0].mxu0
    %v921 = vadd.f32 0.0, %v920
    %v922 = vpop.f32.mrb[0].mxu0
    %v923 = vpop.f32.mrb[0].mxu0
    %v924 = vadd.f32 0.0, %v923
    %v925 = vpop.f32.mrb[0].mxu0
    %926 = vmatprep.mubr.bf16.mxu0 0
    %927 = vmatmul.mubr.bf16.gmra.mrb[0].mxu0 %v751
    %v928 = vpop.f32.mrb[0].mxu0
    %v929 = vadd.f32 0.0, %v928
    %v930 = vpop.f32.mrb[0].mxu0
    %v931 = vpop.f32.mrb[0].mxu0
    %v932 = vadd.f32 0.0, %v931
    %v933 = vpop.f32.mrb[0].mxu0
    %934 = vmatprep.mubr.bf16.mxu0 0
    %935 = vmatmul.mubr.bf16.gmra.mrb[0].mxu0 %v752
    %v936 = vpop.f32.mrb[0].mxu0
    %v937 = vadd.f32 0.0, %v936
    %v938 = vpop.f32.mrb[0].mxu0
    %v939 = vpop.f32.mrb[0].mxu0
    %v940 = vadd.f32 0.0, %v939
    %v941 = vpop.f32.mrb[0].mxu0
    %942 = vmatprep.mubr.bf16.mxu0 0
    %943 = vmatmul.mubr.bf16.gmra.mrb[0].mxu0 %v753
    %v944 = vpop.f32.mrb[0].mxu0
    %v945 = vadd.f32 0.0, %v944
    %v946 = vpop.f32.mrb[0].mxu0
    %v947 = vpop.f32.mrb[0].mxu0
    %v948 = vadd.f32 0.0, %v947
    %v949 = vpop.f32.mrb[0].mxu0
    %950 = vmatprep.mubr.bf16.mxu0 0
    %951 = vmatmul.mubr.bf16.gmra.mrb[0].mxu0 %v754
    %v952 = vpop.f32.mrb[0].mxu0
    %v953 = vadd.f32 0.0, %v952
    %v954 = vpop.f32.mrb[0].mxu0
    %v955 = vpop.f32.mrb[0].mxu0
    %v956 = vadd.f32 0.0, %v955
    %v957 = vpop.f32.mrb[0].mxu0
    %958 = vmatprep.mubr.bf16.mxu0 0
    %959 = vmatmul.mubr.bf16.gmra.mrb[0].mxu0 %v755
    %v960 = vpop.f32.mrb[0].mxu0
    %v961 = vadd.f32 0.0, %v960
    %v962 = vpop.f32.mrb[0].mxu0
    %v963 = vpop.f32.mrb[0].mxu0
    %v964 = vadd.f32 0.0, %v963
    %v965 = vpop.f32.mrb[0].mxu0
    %966 = vmatprep.mubr.bf16.mxu0 0
    %967 = vmatmul.mubr.bf16.gmra.mrb[0].mxu0 %v756
    %v968 = vpop.f32.mrb[0].mxu0
    %v969 = vadd.f32 0.0, %v968
    %v970 = vpop.f32.mrb[0].mxu0
    %v971 = vpop.f32.mrb[0].mxu0
    %v972 = vadd.f32 0.0, %v971
    %v973 = vpop.f32.mrb[0].mxu0
    %974 = vmatprep.mubr.bf16.mxu0 0
    %975 = vmatmul.mubr.bf16.gmra.mrb[0].mxu0 %v757
    %v976 = vpop.f32.mrb[0].mxu0
    %v977 = vadd.f32 0.0, %v976
    %v978 = vpop.f32.mrb[0].mxu0
    %v979 = vpop.f32.mrb[0].mxu0
    %v980 = vadd.f32 0.0, %v979
    %v981 = vpop.f32.mrb[0].mxu0
    %982 = vdwg.mxu0
    %v983 = vpack.c.bf16 %v860, %v857
    %v984 = vpack.c.bf16 %v868, %v865
    %v985 = vpack.c.bf16 %v876, %v873
    %v986 = vpack.c.bf16 %v884, %v881
    %v987 = vpack.c.bf16 %v892, %v889
    %v988 = vpack.c.bf16 %v900, %v897
    %v989 = vpack.c.bf16 %v908, %v905
    %v990 = vpack.c.bf16 %v916, %v913
    %v991 = vpack.c.bf16 %v924, %v921
    %v992 = vpack.c.bf16 %v932, %v929
    %v993 = vpack.c.bf16 %v940, %v937
    %v994 = vpack.c.bf16 %v948, %v945
    %v995 = vpack.c.bf16 %v956, %v953
    %v996 = vpack.c.bf16 %v964, %v961
    %v997 = vpack.c.bf16 %v972, %v969
    %v998 = vpack.c.bf16 %v980, %v977
    %v1015 = vunpack.c.l.b16 %v983
    %v1016 = vunpack.c.h.b16 %v983
    %v1017 = vunpack.c.l.b16 %v984
    %v1018 = vunpack.c.h.b16 %v984
    %v1019 = vunpack.c.l.b16 %v985
    %v1020 = vunpack.c.h.b16 %v985
    %v1021 = vunpack.c.l.b16 %v986
    %v1022 = vunpack.c.h.b16 %v986
    %v1023 = vunpack.c.l.b16 %v987
    %v1024 = vunpack.c.h.b16 %v987
    %v1025 = vunpack.c.l.b16 %v988
    %v1026 = vunpack.c.h.b16 %v988
    %v1027 = vunpack.c.l.b16 %v989
    %v1028 = vunpack.c.h.b16 %v989
    %v1029 = vunpack.c.l.b16 %v990
    %v1030 = vunpack.c.h.b16 %v990
    %v1031 = vunpack.c.l.b16 %v991
    %v1032 = vunpack.c.h.b16 %v991
    %v1033 = vunpack.c.l.b16 %v992
    %v1034 = vunpack.c.h.b16 %v992
    %v1035 = vunpack.c.l.b16 %v993
    %v1036 = vunpack.c.h.b16 %v993
    %v1037 = vunpack.c.l.b16 %v994
    %v1038 = vunpack.c.h.b16 %v994
    %v1039 = vunpack.c.l.b16 %v995
    %v1040 = vunpack.c.h.b16 %v995
    %v1041 = vunpack.c.l.b16 %v996
    %v1042 = vunpack.c.h.b16 %v996
    %v1043 = vunpack.c.l.b16 %v997
    %v1044 = vunpack.c.h.b16 %v997
    %v1045 = vunpack.c.l.b16 %v998
    %v1046 = vunpack.c.h.b16 %v998
    %v1047 = vpack.c.b16 %v1015, %v1015
    %v1048 = vpack.c.b16 %v1016, %v1016
    %v1049 = vpack.c.b16 %v1017, %v1017
    %v1050 = vpack.c.b16 %v1018, %v1018
    %v1051 = vpack.c.b16 %v1019, %v1019
    %v1052 = vpack.c.b16 %v1020, %v1020
    %v1053 = vpack.c.b16 %v1021, %v1021
    %v1054 = vpack.c.b16 %v1022, %v1022
    %v1055 = vpack.c.b16 %v1023, %v1023
    %v1056 = vpack.c.b16 %v1024, %v1024
    %v1057 = vpack.c.b16 %v1025, %v1025
    %v1058 = vpack.c.b16 %v1026, %v1026
    %v1059 = vpack.c.b16 %v1027, %v1027
    %v1060 = vpack.c.b16 %v1028, %v1028
    %v1061 = vpack.c.b16 %v1029, %v1029
    %v1062 = vpack.c.b16 %v1030, %v1030
    %v1063 = vpack.c.b16 %v1031, %v1031
    %v1064 = vpack.c.b16 %v1032, %v1032
    %v1065 = vpack.c.b16 %v1033, %v1033
    %v1066 = vpack.c.b16 %v1034, %v1034
    %v1067 = vpack.c.b16 %v1035, %v1035
    %v1068 = vpack.c.b16 %v1036, %v1036
    %v1069 = vpack.c.b16 %v1037, %v1037
    %v1070 = vpack.c.b16 %v1038, %v1038
    %v1071 = vpack.c.b16 %v1039, %v1039
    %v1072 = vpack.c.b16 %v1040, %v1040
    %v1073 = vpack.c.b16 %v1041, %v1041
    %v1074 = vpack.c.b16 %v1042, %v1042
    %v1075 = vpack.c.b16 %v1043, %v1043
    %v1076 = vpack.c.b16 %v1044, %v1044
    %v1077 = vpack.c.b16 %v1045, %v1045
    %v1078 = vpack.c.b16 %v1046, %v1046
    %1111 = vst [vmem:[%s4] sm:$0xf] %v1047
    %1112 = vst [vmem:[%s4 + $0x4] sm:$0xf] %v1048
    %1113 = vst [vmem:[%s4 + $0x8] sm:$0xf] %v1049
    %1114 = vst [vmem:[%s4 + $0xc] sm:$0xf] %v1050
    %1115 = vst [vmem:[%s4 + $0x10] sm:$0xf] %v1051
    %1116 = vst [vmem:[%s4 + $0x14] sm:$0xf] %v1052
    %1117 = vst [vmem:[%s4 + $0x18] sm:$0xf] %v1053
    %1118 = vst [vmem:[%s4 + $0x1c] sm:$0xf] %v1054
    %1119 = vst [vmem:[%s4 + $0x20] sm:$0xf] %v1055
    %1120 = vst [vmem:[%s4 + $0x24] sm:$0xf] %v1056
    %1121 = vst [vmem:[%s4 + $0x28] sm:$0xf] %v1057
    %1122 = vst [vmem:[%s4 + $0x2c] sm:$0xf] %v1058
    %1123 = vst [vmem:[%s4 + $0x30] sm:$0xf] %v1059
    %1124 = vst [vmem:[%s4 + $0x34] sm:$0xf] %v1060
    %1125 = vst [vmem:[%s4 + $0x38] sm:$0xf] %v1061
    %1126 = vst [vmem:[%s4 + $0x3c] sm:$0xf] %v1062
    %1127 = vst [vmem:[%s4 + $0x40] sm:$0xf] %v1063
    %1128 = vst [vmem:[%s4 + $0x44] sm:$0xf] %v1064
    %1129 = vst [vmem:[%s4 + $0x48] sm:$0xf] %v1065
    %1130 = vst [vmem:[%s4 + $0x4c] sm:$0xf] %v1066
    %1131 = vst [vmem:[%s4 + $0x50] sm:$0xf] %v1067
    %1132 = vst [vmem:[%s4 + $0x54] sm:$0xf] %v1068
    %1133 = vst [vmem:[%s4 + $0x58] sm:$0xf] %v1069
    %1134 = vst [vmem:[%s4 + $0x5c] sm:$0xf] %v1070
    %1135 = vst [vmem:[%s4 + $0x60] sm:$0xf] %v1071
    %1136 = vst [vmem:[%s4 + $0x64] sm:$0xf] %v1072
    %1137 = vst [vmem:[%s4 + $0x68] sm:$0xf] %v1073
    %1138 = vst [vmem:[%s4 + $0x6c] sm:$0xf] %v1074
    %1139 = vst [vmem:[%s4 + $0x70] sm:$0xf] %v1075
    %1140 = vst [vmem:[%s4 + $0x74] sm:$0xf] %v1076
    %1141 = vst [vmem:[%s4 + $0x78] sm:$0xf] %v1077
    %1142 = vst [vmem:[%s4 + $0x7c] sm:$0xf] %v1078
  $region25: #{gcn_forward.4} parent=0 // pred_fallthru
    _
  // Predicated region
  $region26: #{gcn_forward.4} parent=0 // pred_check
    _
  $region27: #{gcn_forward.4} parent=0 // pred_check_branch
    %1144 = sbr.rel (0) target = $region29
  $region28: #{gcn_forward.4} parent=0 // pred_region
    _
  $region29: #{gcn_forward.4} parent=0 // pred_fallthru
    _
  // Predicated region
  $region30: #{gcn_forward.4} parent=0 // pred_check
    _
  $region31: #{gcn_forward.4} parent=0 // pred_check_branch
    %1146 = sbr.rel (0) target = $region33
  $region32: #{gcn_forward.4} parent=0 // pred_region
    _
  $region33: #{gcn_forward.4} parent=0 // pred_fallthru
    _

</llo_original>
